<compile_context>
chip_gen: v7x
topology: tpu7x:2x2x1
jax: 0.10.0
libtpu: 0.0.40
codegen_flags: <defaults>
</compile_context>

<pallas_src>
import functools

import jax
import jax.numpy as jnp
from jax import lax
from jax.experimental import pallas as pl
from jax.experimental.pallas import tpu as pltpu


# -----------------------------------------------------------------------------
# Fused Pallas kernel:
#   feat_conv -> mask noise -> encoder -> enc2dec -> re-mask -> decoder -> SCE
# -----------------------------------------------------------------------------
def _mae_kernel(ui_ref, iu_ref, feats_ref, mix_ref, rowvec_ref, token_ref,
                w_ref, o_ref, tgt_ref, h_ref, *,
                n_users, n_items, feat_conv_layers, n_enc_layers, n_dec_layers,
                alpha):
    U, I = n_users, n_items
    u_rows = pl.ds(0, U)
    i_rows = pl.ds(U, I)

    ui = ui_ref[...]                       # (U, I)
    iu = iu_ref[...]                       # (I, U)

    # ---- feature graph-convolution warm-up (torch.sparse.mm loop) ----
    # feat_conv_layers is a small static int, so the Python loop unrolls.
    item = feats_ref[...]                  # (I, Dmax), zero-padded past feat_dim
    user = item                            # overwritten on first iteration (>=1)
    for _ in range(feat_conv_layers):
        user = jnp.dot(ui, item, preferred_element_type=jnp.float32)
        item = jnp.dot(iu, user, preferred_element_type=jnp.float32)
    tgt_ref[u_rows, :] = user              # loss targets stay resident in VMEM
    tgt_ref[i_rows, :] = item

    # ---- masking noise via mix matrix + mask-token indicator ----
    # keep rows -> identity, token rows -> enc_mask_token,
    # noise rows -> original feats of a random same-side row.
    rv = rowvec_ref[...]                   # (U+I, 3)
    token_ind = rv[:, 0:1]
    zero_mult = rv[:, 1:2]
    loss_w = rv[:, 2:3]
    h_ref[...] = (jnp.dot(mix_ref[...], tgt_ref[...],
                          preferred_element_type=jnp.float32)
                  + token_ind * token_ref[...])

    # ---- bipartite GCN layer ----
    # TODO(synk): the real GCN/GAT modules from setup_module (dropout, norm,
    # residual, attention heads) are external; this is a shape-matching
    # stand-in: propagate across the bipartite graph, then shared linear
    # (+ ReLU on all but the last layer of each stack).
    def gcn_layer(w, apply_relu):
        u_old = h_ref[u_rows, :]
        i_old = h_ref[i_rows, :]
        agg_u = jnp.dot(ui, i_old, preferred_element_type=jnp.float32)
        agg_i = jnp.dot(iu, u_old, preferred_element_type=jnp.float32)
        h_u = jnp.dot(agg_u, w, preferred_element_type=jnp.float32)
        h_i = jnp.dot(agg_i, w, preferred_element_type=jnp.float32)
        if apply_relu:
            h_u = jnp.maximum(h_u, 0.0)
            h_i = jnp.maximum(h_i, 0.0)
        h_ref[u_rows, :] = h_u
        h_ref[i_rows, :] = h_i

    # encoder stack
    for l in range(n_enc_layers):
        gcn_layer(w_ref[l], l < n_enc_layers - 1)

    # encoder_to_decoder (bias=False), batched over user+item rows, then
    # zero the masked rows (re-mask before decoding).
    h_ref[...] = (jnp.dot(h_ref[...], w_ref[n_enc_layers],
                          preferred_element_type=jnp.float32) * zero_mult)

    # decoder stack
    for l in range(n_dec_layers):
        gcn_layer(w_ref[n_enc_layers + 1 + l], l < n_dec_layers - 1)

    # ---- SCE loss over masked rows ----
    # loss_w encodes masked-row selection and 1/n_mask per side, so the
    # weighted sum equals sce(user_rec, user_init) + sce(item_rec, item_init).
    dec = h_ref[...]
    tgt = tgt_ref[...]
    dec_n = dec * lax.rsqrt(
        jnp.maximum(jnp.sum(dec * dec, axis=-1, keepdims=True), 1e-24))
    tgt_n = tgt * lax.rsqrt(
        jnp.maximum(jnp.sum(tgt * tgt, axis=-1, keepdims=True), 1e-24))
    cos = jnp.sum(dec_n * tgt_n, axis=-1, keepdims=True)     # (U+I, 1)
    loss_row = (1.0 - cos) ** alpha                          # alpha: static int
    o_ref[0, 0] = jnp.sum(loss_row * loss_w)


# -----------------------------------------------------------------------------
# JAX glue (all fused under one jit): mask/noise info, weight packing, call.
# -----------------------------------------------------------------------------
def _build_mask_info(key, n, mask_rate, replace_rate):
    """Replicates encoding_mask_noise as dense per-row data.

    Returns (mix, token_ind, zero_mult, loss_w):
      mix @ feats   == keep rows unchanged, token rows zeroed, noise rows
                       replaced by feats[noise_src]
      token_ind     == 1 on rows that receive enc_mask_token
      zero_mult     == 0 on masked rows (re-mask after enc2dec)
      loss_w        == 1/n_mask on masked rows (weighted-sum == masked mean)
    """
    k1, k2, k3 = jax.random.split(key, 3)
    perm = jax.random.permutation(k1, n)
    n_mask = int(n * mask_rate)
    mask_nodes = perm[:n_mask]

    keep_ind = jnp.ones((n,), jnp.float32).at[mask_nodes].set(0.0)
    mix = jnp.diag(keep_ind)
    if replace_rate > 0:
        n_noise = int(replace_rate * n_mask)
        perm_mask = jax.random.permutation(k2, n_mask)
        noise_nodes = mask_nodes[perm_mask[:n_noise]]
        token_nodes = mask_nodes[perm_mask[n_noise:]]
        noise_src = jax.random.permutation(k3, n)[:n_noise]
        mix = mix.at[noise_nodes, noise_src].set(1.0)
    else:
        token_nodes = mask_nodes

    token_ind = jnp.zeros((n,), jnp.float32).at[token_nodes].set(1.0)
    masked_ind = jnp.zeros((n,), jnp.float32).at[mask_nodes].set(1.0)
    zero_mult = 1.0 - masked_ind
    loss_w = masked_ind / float(max(n_mask, 1))
    return mix, token_ind, zero_mult, loss_w


def _augmentation_forward(params, ui_graph, iu_graph, feats, key, *,
                          feat_conv_layers, mask_rate, replace_rate, sce_alpha):
    assert feat_conv_layers >= 1
    n_users, n_items = ui_graph.shape
    n = n_users + n_items
    feat_dim = feats.shape[1]

    enc_ws = list(params["encoder_weights"])
    dec_ws = list(params["decoder_weights"])
    all_ws = enc_ws + [params["enc2dec"]] + dec_ws
    d_max = max([feat_dim] + [d for w in all_ws for d in w.shape])
    d_max = ((d_max + 127) // 128) * 128      # lane-dense last dims everywhere

    # masking noise (random permutations / scatters stay in plain JAX; the
    # whole forward is one jitted executable so they fuse with everything else)
    ku, ki = jax.random.split(key)
    mix_u, tok_u, zero_u, lw_u = _build_mask_info(ku, n_users, mask_rate, replace_rate)
    mix_i, tok_i, zero_i, lw_i = _build_mask_info(ki, n_items, mask_rate, replace_rate)

    mix = jnp.zeros((n, n), jnp.float32)
    mix = mix.at[:n_users, :n_users].set(mix_u)
    mix = mix.at[n_users:, n_users:].set(mix_i)
    rowvec = jnp.stack([jnp.concatenate([tok_u, tok_i]),
                        jnp.concatenate([zero_u, zero_i]),
                        jnp.concatenate([lw_u, lw_i])], axis=1)   # (U+I, 3)

    def pad2(w):
        out = jnp.zeros((d_max, d_max), jnp.float32)
        return out.at[:w.shape[0], :w.shape[1]].set(w)

    w_stack = jnp.stack([pad2(w) for w in all_ws])                # (L, Dmax, Dmax)
    feats_p = jnp.zeros((n_items, d_max), jnp.float32).at[:, :feat_dim].set(feats)
    token_p = jnp.zeros((1, d_max), jnp.float32).at[:, :feat_dim].set(
        params["enc_mask_token"])

    kernel = functools.partial(
        _mae_kernel, n_users=n_users, n_items=n_items,
        feat_conv_layers=feat_conv_layers, n_enc_layers=len(enc_ws),
        n_dec_layers=len(dec_ws), alpha=sce_alpha)

    out = pl.pallas_call(
        kernel,
        out_shape=jax.ShapeDtypeStruct((1, 1), jnp.float32),
        in_specs=[pl.BlockSpec(memory_space=pltpu.MemorySpace.VMEM)] * 7,
        out_specs=pl.BlockSpec(memory_space=pltpu.MemorySpace.SMEM),
        scratch_shapes=[pltpu.VMEM((n, d_max), jnp.float32),   # targets slab
                        pltpu.VMEM((n, d_max), jnp.float32)],  # hidden slab
    )(ui_graph, iu_graph, feats_p, mix, rowvec, token_p, w_stack)
    return out[0, 0]


# One jitted executable for the whole forward (dispatch-bound workload).
augmentation_forward = jax.jit(
    _augmentation_forward,
    static_argnames=("feat_conv_layers", "mask_rate", "replace_rate", "sce_alpha"))


# -----------------------------------------------------------------------------
# Graph preprocessing (csr_norm mean_flag=True equivalent), outside the jit.
# -----------------------------------------------------------------------------
def row_mean_norm(mat):
    rowsum = jnp.sum(mat, axis=1, keepdims=True)
    scale = jnp.power(rowsum + 1e-8, -0.5)
    scale = jnp.where(jnp.isinf(scale), 0.0, scale)
    return mat * scale


# -----------------------------------------------------------------------------
# Main
# -----------------------------------------------------------------------------
if __name__ == "__main__":
    key = jax.random.PRNGKey(0)
    k_graph, k_feat, k_w0, k_w1, k_e2d, k_wd, k_mask = jax.random.split(key, 7)

    n_users, n_items = 16, 24          # multiples of 8 (sublane-aligned views)
    feat_dim = 64                      # enc_in_dim (image/text feature size)
    hidden_dim = 32

    # item features (config['image_feats'])
    feats = jax.random.normal(k_feat, (n_items, feat_dim), jnp.float32)

    # bipartite interaction graph + mean-normalized ui / iu graphs (densified)
    ui_raw = (jax.random.uniform(k_graph, (n_users, n_items)) < 0.3).astype(jnp.float32)
    ui_graph = row_mean_norm(ui_raw)
    iu_graph = row_mean_norm(ui_raw.T)

    # deterministic parameter init (shapes follow __init__)
    params = dict(
        enc_mask_token=jnp.zeros((1, feat_dim), jnp.float32),
        encoder_weights=[
            0.1 * jax.random.normal(k_w0, (feat_dim, hidden_dim), jnp.float32),
            0.1 * jax.random.normal(k_w1, (hidden_dim, hidden_dim), jnp.float32),
        ],
        enc2dec=0.1 * jax.random.normal(k_e2d, (hidden_dim, hidden_dim), jnp.float32),
        decoder_weights=[
            0.1 * jax.random.normal(k_wd, (hidden_dim, feat_dim), jnp.float32),
        ],
    )

    loss = augmentation_forward(params, ui_graph, iu_graph, feats, k_mask,
                                feat_conv_layers=1, mask_rate=0.5,
                                replace_rate=0.25, sce_alpha=3)
    loss = jax.block_until_ready(loss)
    assert jnp.isfinite(loss)
    print("KERNEL_OK")
</pallas_src>

<mosaic_0001>
module attributes {stable_mosaic.version = 11 : i64} {
  func.func @_mae_kernel(%arg0: memref<16x24xf32, #tpu.memory_space<vmem>>, %arg1: memref<24x16xf32, #tpu.memory_space<vmem>>, %arg2: memref<24x128xf32, #tpu.memory_space<vmem>>, %arg3: memref<40x40xf32, #tpu.memory_space<vmem>>, %arg4: memref<40x3xf32, #tpu.memory_space<vmem>>, %arg5: memref<1x128xf32, #tpu.memory_space<vmem>>, %arg6: memref<4x128x128xf32, #tpu.memory_space<vmem>>, %arg7: memref<1x1xf32, #tpu.memory_space<smem>>, %arg8: memref<40x128xf32, #tpu.memory_space<vmem>>, %arg9: memref<40x128xf32, #tpu.memory_space<vmem>>) attributes {dimension_semantics = [], scalar_prefetch = 0 : i64, scratch_operands = 2 : i64, tpu.core_type = #tpu.core_type<tc>} {
    %c0 = arith.constant 0 : index
    %c0_0 = arith.constant 0 : index
    %0 = vector.load %arg0[%c0, %c0_0] : memref<16x24xf32, #tpu.memory_space<vmem>>, vector<16x24xf32>
    %c0_1 = arith.constant 0 : index
    %c0_2 = arith.constant 0 : index
    %1 = vector.load %arg1[%c0_1, %c0_2] : memref<24x16xf32, #tpu.memory_space<vmem>>, vector<24x16xf32>
    %c0_3 = arith.constant 0 : index
    %c0_4 = arith.constant 0 : index
    %2 = vector.load %arg2[%c0_3, %c0_4] : memref<24x128xf32, #tpu.memory_space<vmem>>, vector<24x128xf32>
    %cst = arith.constant dense<0.000000e+00> : vector<16x128xf32>
    %3 = tpu.matmul %0, %2, %cst {dimension_numbers = #tpu.dot_dimension_numbers<[1], [0], [0], [1], [0, 0, 1, 1], [], []>} : vector<16x24xf32>, vector<24x128xf32>, vector<16x128xf32> -> vector<16x128xf32>
    %cst_5 = arith.constant dense<0.000000e+00> : vector<24x128xf32>
    %4 = tpu.matmul %1, %3, %cst_5 {dimension_numbers = #tpu.dot_dimension_numbers<[1], [0], [0], [1], [0, 0, 1, 1], [], []>} : vector<24x16xf32>, vector<16x128xf32>, vector<24x128xf32> -> vector<24x128xf32>
    %c0_6 = arith.constant 0 : index
    %c0_7 = arith.constant 0 : index
    %5 = vector.load %arg8[%c0_6, %c0_7] : memref<40x128xf32, #tpu.memory_space<vmem>>, vector<16x128xf32>
    tpu.vector_store %arg8[%c0_6, %c0_7], %3 {strides = array<i32>} : memref<40x128xf32, #tpu.memory_space<vmem>>, vector<16x128xf32>,
    %c16 = arith.constant 16 : index
    %c0_8 = arith.constant 0 : index
    %6 = vector.load %arg8[%c16, %c0_8] : memref<40x128xf32, #tpu.memory_space<vmem>>, vector<24x128xf32>
    tpu.vector_store %arg8[%c16, %c0_8], %4 {strides = array<i32>} : memref<40x128xf32, #tpu.memory_space<vmem>>, vector<24x128xf32>,
    %c0_9 = arith.constant 0 : index
    %c0_10 = arith.constant 0 : index
    %7 = vector.load %arg4[%c0_9, %c0_10] : memref<40x3xf32, #tpu.memory_space<vmem>>, vector<40x3xf32>
    %8 = vector.extract_strided_slice %7 {offsets = [0, 0], sizes = [40, 1], strides = [1, 1]} : vector<40x3xf32> to vector<40x1xf32>
    %9 = vector.extract_strided_slice %7 {offsets = [0, 1], sizes = [40, 1], strides = [1, 1]} : vector<40x3xf32> to vector<40x1xf32>
    %10 = vector.extract_strided_slice %7 {offsets = [0, 2], sizes = [40, 1], strides = [1, 1]} : vector<40x3xf32> to vector<40x1xf32>
    %c0_11 = arith.constant 0 : index
    %c0_12 = arith.constant 0 : index
    %11 = vector.load %arg3[%c0_11, %c0_12] : memref<40x40xf32, #tpu.memory_space<vmem>>, vector<40x40xf32>
    %c0_13 = arith.constant 0 : index
    %c0_14 = arith.constant 0 : index
    %12 = vector.load %arg8[%c0_13, %c0_14] : memref<40x128xf32, #tpu.memory_space<vmem>>, vector<40x128xf32>
    %cst_15 = arith.constant dense<0.000000e+00> : vector<40x128xf32>
    %13 = tpu.matmul %11, %12, %cst_15 {dimension_numbers = #tpu.dot_dimension_numbers<[1], [0], [0], [1], [0, 0, 1, 1], [], []>} : vector<40x40xf32>, vector<40x128xf32>, vector<40x128xf32> -> vector<40x128xf32>
    %c0_16 = arith.constant 0 : index
    %c0_17 = arith.constant 0 : index
    %14 = vector.load %arg5[%c0_16, %c0_17] : memref<1x128xf32, #tpu.memory_space<vmem>>, vector<1x128xf32>
    %15 = vector.broadcast %8 : vector<40x1xf32> to vector<40x128xf32>
    %16 = vector.broadcast %14 : vector<1x128xf32> to vector<40x128xf32>
    %17 = arith.mulf %15, %16 : vector<40x128xf32>
    %18 = arith.addf %13, %17 : vector<40x128xf32>
    %c0_18 = arith.constant 0 : index
    %c0_19 = arith.constant 0 : index
    %19 = vector.load %arg9[%c0_18, %c0_19] : memref<40x128xf32, #tpu.memory_space<vmem>>, vector<40x128xf32>
    tpu.vector_store %arg9[%c0_18, %c0_19], %18 {strides = array<i32>} : memref<40x128xf32, #tpu.memory_space<vmem>>, vector<40x128xf32>,
    %c0_20 = arith.constant 0 : index
    %c0_21 = arith.constant 0 : index
    %c0_22 = arith.constant 0 : index
    %20 = vector.load %arg6[%c0_20, %c0_21, %c0_22] : memref<4x128x128xf32, #tpu.memory_space<vmem>>, vector<1x128x128xf32>
    %21 = vector.shape_cast %20 : vector<1x128x128xf32> to vector<128x128xf32>
    %c0_23 = arith.constant 0 : index
    %c0_24 = arith.constant 0 : index
    %22 = vector.load %arg9[%c0_23, %c0_24] : memref<40x128xf32, #tpu.memory_space<vmem>>, vector<16x128xf32>
    %c16_25 = arith.constant 16 : index
    %c0_26 = arith.constant 0 : index
    %23 = vector.load %arg9[%c16_25, %c0_26] : memref<40x128xf32, #tpu.memory_space<vmem>>, vector<24x128xf32>
    %cst_27 = arith.constant dense<0.000000e+00> : vector<16x128xf32>
    %24 = tpu.matmul %0, %23, %cst_27 {dimension_numbers = #tpu.dot_dimension_numbers<[1], [0], [0], [1], [0, 0, 1, 1], [], []>} : vector<16x24xf32>, vector<24x128xf32>, vector<16x128xf32> -> vector<16x128xf32>
    %cst_28 = arith.constant dense<0.000000e+00> : vector<24x128xf32>
    %25 = tpu.matmul %1, %22, %cst_28 {dimension_numbers = #tpu.dot_dimension_numbers<[1], [0], [0], [1], [0, 0, 1, 1], [], []>} : vector<24x16xf32>, vector<16x128xf32>, vector<24x128xf32> -> vector<24x128xf32>
    %cst_29 = arith.constant dense<0.000000e+00> : vector<16x128xf32>
    %26 = tpu.matmul %24, %21, %cst_29 {dimension_numbers = #tpu.dot_dimension_numbers<[1], [0], [0], [1], [0, 0, 1, 1], [], []>} : vector<16x128xf32>, vector<128x128xf32>, vector<16x128xf32> -> vector<16x128xf32>
    %cst_30 = arith.constant dense<0.000000e+00> : vector<24x128xf32>
    %27 = tpu.matmul %25, %21, %cst_30 {dimension_numbers = #tpu.dot_dimension_numbers<[1], [0], [0], [1], [0, 0, 1, 1], [], []>} : vector<24x128xf32>, vector<128x128xf32>, vector<24x128xf32> -> vector<24x128xf32>
    %cst_31 = arith.constant 0.000000e+00 : f32
    %28 = vector.broadcast %cst_31 : f32 to vector<16x128xf32>
    %29 = arith.maximumf %26, %28 : vector<16x128xf32>
    %cst_32 = arith.constant 0.000000e+00 : f32
    %30 = vector.broadcast %cst_32 : f32 to vector<24x128xf32>
    %31 = arith.maximumf %27, %30 : vector<24x128xf32>
    %c0_33 = arith.constant 0 : index
    %c0_34 = arith.constant 0 : index
    %32 = vector.load %arg9[%c0_33, %c0_34] : memref<40x128xf32, #tpu.memory_space<vmem>>, vector<16x128xf32>
    tpu.vector_store %arg9[%c0_33, %c0_34], %29 {strides = array<i32>} : memref<40x128xf32, #tpu.memory_space<vmem>>, vector<16x128xf32>,
    %c16_35 = arith.constant 16 : index
    %c0_36 = arith.constant 0 : index
    %33 = vector.load %arg9[%c16_35, %c0_36] : memref<40x128xf32, #tpu.memory_space<vmem>>, vector<24x128xf32>
    tpu.vector_store %arg9[%c16_35, %c0_36], %31 {strides = array<i32>} : memref<40x128xf32, #tpu.memory_space<vmem>>, vector<24x128xf32>,
    %c1 = arith.constant 1 : index
    %c0_37 = arith.constant 0 : index
    %c0_38 = arith.constant 0 : index
    %34 = vector.load %arg6[%c1, %c0_37, %c0_38] : memref<4x128x128xf32, #tpu.memory_space<vmem>>, vector<1x128x128xf32>
    %35 = vector.shape_cast %34 : vector<1x128x128xf32> to vector<128x128xf32>
    %c0_39 = arith.constant 0 : index
    %c0_40 = arith.constant 0 : index
    %36 = vector.load %arg9[%c0_39, %c0_40] : memref<40x128xf32, #tpu.memory_space<vmem>>, vector<16x128xf32>
    %c16_41 = arith.constant 16 : index
    %c0_42 = arith.constant 0 : index
    %37 = vector.load %arg9[%c16_41, %c0_42] : memref<40x128xf32, #tpu.memory_space<vmem>>, vector<24x128xf32>
    %cst_43 = arith.constant dense<0.000000e+00> : vector<16x128xf32>
    %38 = tpu.matmul %0, %37, %cst_43 {dimension_numbers = #tpu.dot_dimension_numbers<[1], [0], [0], [1], [0, 0, 1, 1], [], []>} : vector<16x24xf32>, vector<24x128xf32>, vector<16x128xf32> -> vector<16x128xf32>
    %cst_44 = arith.constant dense<0.000000e+00> : vector<24x128xf32>
    %39 = tpu.matmul %1, %36, %cst_44 {dimension_numbers = #tpu.dot_dimension_numbers<[1], [0], [0], [1], [0, 0, 1, 1], [], []>} : vector<24x16xf32>, vector<16x128xf32>, vector<24x128xf32> -> vector<24x128xf32>
    %cst_45 = arith.constant dense<0.000000e+00> : vector<16x128xf32>
    %40 = tpu.matmul %38, %35, %cst_45 {dimension_numbers = #tpu.dot_dimension_numbers<[1], [0], [0], [1], [0, 0, 1, 1], [], []>} : vector<16x128xf32>, vector<128x128xf32>, vector<16x128xf32> -> vector<16x128xf32>
    %cst_46 = arith.constant dense<0.000000e+00> : vector<24x128xf32>
    %41 = tpu.matmul %39, %35, %cst_46 {dimension_numbers = #tpu.dot_dimension_numbers<[1], [0], [0], [1], [0, 0, 1, 1], [], []>} : vector<24x128xf32>, vector<128x128xf32>, vector<24x128xf32> -> vector<24x128xf32>
    %c0_47 = arith.constant 0 : index
    %c0_48 = arith.constant 0 : index
    %42 = vector.load %arg9[%c0_47, %c0_48] : memref<40x128xf32, #tpu.memory_space<vmem>>, vector<16x128xf32>
    tpu.vector_store %arg9[%c0_47, %c0_48], %40 {strides = array<i32>} : memref<40x128xf32, #tpu.memory_space<vmem>>, vector<16x128xf32>,
    %c16_49 = arith.constant 16 : index
    %c0_50 = arith.constant 0 : index
    %43 = vector.load %arg9[%c16_49, %c0_50] : memref<40x128xf32, #tpu.memory_space<vmem>>, vector<24x128xf32>
    tpu.vector_store %arg9[%c16_49, %c0_50], %41 {strides = array<i32>} : memref<40x128xf32, #tpu.memory_space<vmem>>, vector<24x128xf32>,
    %c0_51 = arith.constant 0 : index
    %c0_52 = arith.constant 0 : index
    %44 = vector.load %arg9[%c0_51, %c0_52] : memref<40x128xf32, #tpu.memory_space<vmem>>, vector<40x128xf32>
    %c2 = arith.constant 2 : index
    %c0_53 = arith.constant 0 : index
    %c0_54 = arith.constant 0 : index
    %45 = vector.load %arg6[%c2, %c0_53, %c0_54] : memref<4x128x128xf32, #tpu.memory_space<vmem>>, vector<1x128x128xf32>
    %46 = vector.shape_cast %45 : vector<1x128x128xf32> to vector<128x128xf32>
    %cst_55 = arith.constant dense<0.000000e+00> : vector<40x128xf32>
    %47 = tpu.matmul %44, %46, %cst_55 {dimension_numbers = #tpu.dot_dimension_numbers<[1], [0], [0], [1], [0, 0, 1, 1], [], []>} : vector<40x128xf32>, vector<128x128xf32>, vector<40x128xf32> -> vector<40x128xf32>
    %48 = vector.broadcast %9 : vector<40x1xf32> to vector<40x128xf32>
    %49 = arith.mulf %47, %48 : vector<40x128xf32>
    %c0_56 = arith.constant 0 : index
    %c0_57 = arith.constant 0 : index
    %50 = vector.load %arg9[%c0_56, %c0_57] : memref<40x128xf32, #tpu.memory_space<vmem>>, vector<40x128xf32>
    tpu.vector_store %arg9[%c0_56, %c0_57], %49 {strides = array<i32>} : memref<40x128xf32, #tpu.memory_space<vmem>>, vector<40x128xf32>,
    %c3 = arith.constant 3 : index
    %c0_58 = arith.constant 0 : index
    %c0_59 = arith.constant 0 : index
    %51 = vector.load %arg6[%c3, %c0_58, %c0_59] : memref<4x128x128xf32, #tpu.memory_space<vmem>>, vector<1x128x128xf32>
    %52 = vector.shape_cast %51 : vector<1x128x128xf32> to vector<128x128xf32>
    %c0_60 = arith.constant 0 : index
    %c0_61 = arith.constant 0 : index
    %53 = vector.load %arg9[%c0_60, %c0_61] : memref<40x128xf32, #tpu.memory_space<vmem>>, vector<16x128xf32>
    %c16_62 = arith.constant 16 : index
    %c0_63 = arith.constant 0 : index
    %54 = vector.load %arg9[%c16_62, %c0_63] : memref<40x128xf32, #tpu.memory_space<vmem>>, vector<24x128xf32>
    %cst_64 = arith.constant dense<0.000000e+00> : vector<16x128xf32>
    %55 = tpu.matmul %0, %54, %cst_64 {dimension_numbers = #tpu.dot_dimension_numbers<[1], [0], [0], [1], [0, 0, 1, 1], [], []>} : vector<16x24xf32>, vector<24x128xf32>, vector<16x128xf32> -> vector<16x128xf32>
    %cst_65 = arith.constant dense<0.000000e+00> : vector<24x128xf32>
    %56 = tpu.matmul %1, %53, %cst_65 {dimension_numbers = #tpu.dot_dimension_numbers<[1], [0], [0], [1], [0, 0, 1, 1], [], []>} : vector<24x16xf32>, vector<16x128xf32>, vector<24x128xf32> -> vector<24x128xf32>
    %cst_66 = arith.constant dense<0.000000e+00> : vector<16x128xf32>
    %57 = tpu.matmul %55, %52, %cst_66 {dimension_numbers = #tpu.dot_dimension_numbers<[1], [0], [0], [1], [0, 0, 1, 1], [], []>} : vector<16x128xf32>, vector<128x128xf32>, vector<16x128xf32> -> vector<16x128xf32>
    %cst_67 = arith.constant dense<0.000000e+00> : vector<24x128xf32>
    %58 = tpu.matmul %56, %52, %cst_67 {dimension_numbers = #tpu.dot_dimension_numbers<[1], [0], [0], [1], [0, 0, 1, 1], [], []>} : vector<24x128xf32>, vector<128x128xf32>, vector<24x128xf32> -> vector<24x128xf32>
    %c0_68 = arith.constant 0 : index
    %c0_69 = arith.constant 0 : index
    %59 = vector.load %arg9[%c0_68, %c0_69] : memref<40x128xf32, #tpu.memory_space<vmem>>, vector<16x128xf32>
    tpu.vector_store %arg9[%c0_68, %c0_69], %57 {strides = array<i32>} : memref<40x128xf32, #tpu.memory_space<vmem>>, vector<16x128xf32>,
    %c16_70 = arith.constant 16 : index
    %c0_71 = arith.constant 0 : index
    %60 = vector.load %arg9[%c16_70, %c0_71] : memref<40x128xf32, #tpu.memory_space<vmem>>, vector<24x128xf32>
    tpu.vector_store %arg9[%c16_70, %c0_71], %58 {strides = array<i32>} : memref<40x128xf32, #tpu.memory_space<vmem>>, vector<24x128xf32>,
    %c0_72 = arith.constant 0 : index
    %c0_73 = arith.constant 0 : index
    %61 = vector.load %arg9[%c0_72, %c0_73] : memref<40x128xf32, #tpu.memory_space<vmem>>, vector<40x128xf32>
    %c0_74 = arith.constant 0 : index
    %c0_75 = arith.constant 0 : index
    %62 = vector.load %arg8[%c0_74, %c0_75] : memref<40x128xf32, #tpu.memory_space<vmem>>, vector<40x128xf32>
    %63 = arith.mulf %61, %61 : vector<40x128xf32>
    %cst_76 = arith.constant dense<0.000000e+00> : vector<40xf32>
    %64 = vector.multi_reduction <add>, %63, %cst_76 [1] : vector<40x128xf32> to vector<40xf32>
    %65 = vector.shape_cast %64 : vector<40xf32> to vector<40x1xf32>
    %cst_77 = arith.constant 1.000000e-24 : f32
    %66 = vector.broadcast %cst_77 : f32 to vector<40x1xf32>
    %67 = arith.maximumf %65, %66 : vector<40x1xf32>
    %68 = math.rsqrt %67 : vector<40x1xf32>
    %69 = vector.broadcast %68 : vector<40x1xf32> to vector<40x128xf32>
    %70 = arith.mulf %61, %69 : vector<40x128xf32>
    %71 = arith.mulf %62, %62 : vector<40x128xf32>
    %cst_78 = arith.constant dense<0.000000e+00> : vector<40xf32>
    %72 = vector.multi_reduction <add>, %71, %cst_78 [1] : vector<40x128xf32> to vector<40xf32>
    %73 = vector.shape_cast %72 : vector<40xf32> to vector<40x1xf32>
    %cst_79 = arith.constant 1.000000e-24 : f32
    %74 = vector.broadcast %cst_79 : f32 to vector<40x1xf32>
    %75 = arith.maximumf %73, %74 : vector<40x1xf32>
    %76 = math.rsqrt %75 : vector<40x1xf32>
    %77 = vector.broadcast %76 : vector<40x1xf32> to vector<40x128xf32>
    %78 = arith.mulf %62, %77 : vector<40x128xf32>
    %79 = arith.mulf %70, %78 : vector<40x128xf32>
    %cst_80 = arith.constant dense<0.000000e+00> : vector<40xf32>
    %80 = vector.multi_reduction <add>, %79, %cst_80 [1] : vector<40x128xf32> to vector<40xf32>
    %81 = vector.shape_cast %80 : vector<40xf32> to vector<40x1xf32>
    %cst_81 = arith.constant 1.000000e+00 : f32
    %82 = vector.broadcast %cst_81 : f32 to vector<40x1xf32>
    %83 = arith.subf %82, %81 : vector<40x1xf32>
    %84 = arith.mulf %83, %83 : vector<40x1xf32>
    %85 = arith.mulf %83, %84 : vector<40x1xf32>
    %86 = arith.mulf %85, %10 : vector<40x1xf32>
    %87 = vector.shape_cast %86 : vector<40x1xf32> to vector<1x40x1xf32>
    %cst_82 = arith.constant dense<0.000000e+00> : vector<1xf32>
    %88 = vector.multi_reduction <add>, %87, %cst_82 [1, 2] : vector<1x40x1xf32> to vector<1xf32>
    %89 = vector.shape_cast %88 : vector<1xf32> to vector<1x1x1xf32>
    %90 = vector.extract %89[0, 0, 0] : f32 from vector<1x1x1xf32>
    %c0_83 = arith.constant 0 : index
    %c0_84 = arith.constant 0 : index
    %91 = memref.load %arg7[%c0_83, %c0_84] : memref<1x1xf32, #tpu.memory_space<smem>>
    memref.store %90, %arg7[%c0_83, %c0_84] : memref<1x1xf32, #tpu.memory_space<smem>>
    return
  }
}

</mosaic_0001>

<llo_original>
// kernel: _augmentation_forward.1
$region0: #{_augmentation_forward.1}
  #allocation0 [shape = 'u32[]', space=smem, size = 0x4, offset = 0x4, fixed_abs, tag = 'smem constant byte address 0x4 - core index']
  #allocation1 [shape = 'u32[144,128]{1,0:T(1,128)}', space=vmem, size = 0x12000, scoped, tag = 'internal scratch']
  #allocation2 [shape = 'f32[40,128]{1,0:T(8,128)}', space=vmem, size = 0x5000, scoped, tag = 'scratch operand']
  #allocation3 [shape = 'f32[40,128]{1,0:T(8,128)}', space=vmem, size = 0x5000, scoped, tag = 'scratch operand']
  %s0 = inlined_call_operand.vmem [shape: f32[16,24], index: 0, kind: input, shape index: {}]
  %s1 = inlined_call_operand.vmem [shape: f32[24,16], index: 1, kind: input, shape index: {}]
  %s2 = inlined_call_operand.vmem [shape: f32[24,128], index: 2, kind: input, shape index: {}]
  %s3 = inlined_call_operand.vmem [shape: f32[40,40], index: 3, kind: input, shape index: {}]
  %s4 = inlined_call_operand.vmem [shape: f32[40,3], index: 4, kind: input, shape index: {}]
  %s5 = inlined_call_operand.vmem [shape: f32[1,128], index: 5, kind: input, shape index: {}]
  %s6 = inlined_call_operand.vmem [shape: f32[4,128,128], index: 6, kind: input, shape index: {}]
  %s7 = inlined_call_operand.hbm [shape: f32[1,1], index: 7, kind: output, shape index: {}]
  %s8 = sld [smem:[#allocation0]]
  $region38: #{_augmentation_forward.1} parent=0
    _
  %s10 = ssub.s32 1, %s8
  %s11 = scalar_select 0, %s10, %s8
  $region1: #{_augmentation_forward.1} parent=0
    #allocation4 [shape = 'u8[512]{0}', space=smem, size = 0x200, scoped, tag = 'output window, operand 0, single buffered']
    #allocation5 [shape = 's32[1]{0}', space=sflag, size = 0x4, scoped, tag = 'scoped memory for _augmentation_forward.1']
    %12 = vsyncpa [#allocation5], 0
    // Predicated region
    $region2: #{_augmentation_forward.1} parent=1 // pred_check
      _
    $region3: #{_augmentation_forward.1} parent=1 // pred_check_branch
      %14 = sbr.rel (0) target = $region5
    $region4: #{_augmentation_forward.1} parent=1 // pred_region
      _
    $region5: #{_augmentation_forward.1} parent=1 // pred_fallthru
      _
    // Predicated region
    $region6: #{_augmentation_forward.1} parent=1 // pred_check
      _
    $region7: #{_augmentation_forward.1} parent=1 // pred_check_branch
      %16 = sbr.rel (0) target = $region9
    $region8: #{_augmentation_forward.1} parent=1 // pred_region
      _
    $region9: #{_augmentation_forward.1} parent=1 // pred_fallthru
      _
    // Predicated region
    $region10: #{_augmentation_forward.1} parent=1 // pred_check
      _
    $region11: #{_augmentation_forward.1} parent=1 // pred_check_branch
      %18 = sbr.rel (0) target = $region13
    $region12: #{_augmentation_forward.1} parent=1 // pred_region
      _
    $region13: #{_augmentation_forward.1} parent=1 // pred_fallthru
      _
    // Predicated region
    $region14: #{_augmentation_forward.1} parent=1 // pred_check
      _
    $region15: #{_augmentation_forward.1} parent=1 // pred_check_branch
      %20 = sbr.rel (0) target = $region17
    $region16: #{_augmentation_forward.1} parent=1 // pred_region
      _
    $region17: #{_augmentation_forward.1} parent=1 // pred_fallthru
      _
    // Predicated region
    $region18: #{_augmentation_forward.1} parent=1 // pred_check
      _
    $region19: #{_augmentation_forward.1} parent=1 // pred_check_branch
      %22 = sbr.rel (0) target = $region21
    $region20: #{_augmentation_forward.1} parent=1 // pred_region
      _
    $region21: #{_augmentation_forward.1} parent=1 // pred_fallthru
      _
    // Predicated region
    $region22: #{_augmentation_forward.1} parent=1 // pred_check
      _
    $region23: #{_augmentation_forward.1} parent=1 // pred_check_branch
      %24 = sbr.rel (0) target = $region25
    $region24: #{_augmentation_forward.1} parent=1 // pred_region
      _
    $region25: #{_augmentation_forward.1} parent=1 // pred_fallthru
      _
    // Predicated region
    $region26: #{_augmentation_forward.1} parent=1 // pred_check
      _
    $region27: #{_augmentation_forward.1} parent=1 // pred_check_branch
      %26 = sbr.rel (0) target = $region29
    $region28: #{_augmentation_forward.1} parent=1 // pred_region
      _
    $region29: #{_augmentation_forward.1} parent=1 // pred_fallthru
      _
    %v27 = vld [vmem:[%s0] sm:$0xff]
    %v28 = vld [vmem:[%s0 + $0x8] sm:$0xff]
    %v29 = vld [vmem:[%s1] sm:$0xff]
    %v30 = vld [vmem:[%s1 + $0x8] sm:$0xff]
    %v31 = vld [vmem:[%s1 + $0x10] sm:$0xff]
    %v32 = vld [vmem:[%s2] sm:$0xff]
    %v33 = vld [vmem:[%s2 + $0x8] sm:$0xff]
    %v34 = vld [vmem:[%s2 + $0x10] sm:$0xff]
    %vm35 = vcmask 195584
    %v37 = vsel %vm35, %v27, 0
    %v40 = vsel %vm35, %v28, 0
    %42 = vmatprep.subr.mxu0 0.0
    %43 = vmatpush1.msra.mxu0 %v32
    %44 = vmatprep.subr.mxu0 0.0
    %45 = vmatpush1.msra.mxu0 %v33
    %46 = vmatprep.subr.mxu0 0.0
    %47 = vmatpush1.msra.mxu0 %v34
    %48 = vmatprep.subr.mxu0 0.0
    %49 = vmatpush1.msra.mxu0 0.0
    %50 = vmatprep.subr.mxu0 0.0
    %51 = vmatpush1.msra.mxu0 0.0
    %52 = vmatprep.subr.mxu0 0.0
    %53 = vmatpush1.msra.mxu0 0.0
    %54 = vmatprep.subr.mxu0 0.0
    %55 = vmatpush1.msra.mxu0 0.0
    %56 = vmatprep.subr.mxu0 0.0
    %57 = vmatpush1.msra.mxu0 0.0
    %58 = vmatprep.subr.mxu0 0.0
    %59 = vmatpush1.msra.mxu0 0.0
    %60 = vmatprep.subr.mxu0 0.0
    %61 = vmatpush1.msra.mxu0 0.0
    %62 = vmatprep.subr.mxu0 0.0
    %63 = vmatpush1.msra.mxu0 0.0
    %64 = vmatprep.subr.mxu0 0.0
    %65 = vmatpush1.msra.mxu0 0.0
    %66 = vmatprep.subr.mxu0 0.0
    %67 = vmatpush1.msra.mxu0 0.0
    %68 = vmatprep.subr.mxu0 0.0
    %69 = vmatpush1.msra.mxu0 0.0
    %70 = vmatprep.subr.mxu0 0.0
    %71 = vmatpush1.msra.mxu0 0.0
    %72 = vmatprep.subr.mxu0 0.0
    %73 = vmatpush1.msra.mxu0 0.0
    %74 = vmatprep.subr.mxu0 0.0
    %75 = vmatpush1.msra.mxu0 0.0
    %76 = vmatprep.subr.mxu0 0.0
    %77 = vmatpush1.msra.mxu0 0.0
    %78 = vmatprep.subr.mxu0 0.0
    %79 = vmatpush1.msra.mxu0 0.0
    %80 = vmatprep.subr.mxu0 0.0
    %81 = vmatpush1.msra.mxu0 0.0
    %82 = vmatprep.subr.mxu0 0.0
    %83 = vmatpush1.msra.mxu0 0.0
    %84 = vmatprep.subr.mxu0 0.0
    %85 = vmatpush1.msra.mxu0 0.0
    %86 = vmatprep.subr.mxu0 0.0
    %87 = vmatpush1.msra.mxu0 0.0
    %88 = vmatprep.subr.mxu0 0.0
    %89 = vmatpush1.msra.mxu0 0.0
    %90 = vmatprep.subr.mxu0 0.0
    %91 = vmatpush1.msra.mxu0 0.0
    %92 = vmatprep.subr.mxu0 0.0
    %93 = vmatpush1.msra.mxu0 0.0
    %94 = vmatprep.subr.mxu0 0.0
    %95 = vmatpush1.msra.mxu0 0.0
    %96 = vmatprep.subr.mxu0 0.0
    %97 = vmatpush1.msra.mxu0 0.0
    %98 = vmatprep.subr.mxu0 0.0
    %99 = vmatpush1.msra.mxu0 0.0
    %100 = vmatprep.subr.mxu0 0.0
    %101 = vmatpush1.msra.mxu0 0.0
    %102 = vmatprep.subr.mxu0 0.0
    %103 = vmatpush1.msra.mxu0 0.0
    %104 = vmatprep.subr.mxu0 0.0
    %105 = vmatpush1.msra.mxu0 0.0
    %106 = vmatprep.mubr.f32.mxu0 0.0
    %107 = vmatmul.mubr.f32.gmra.mrb[0].mxu0 %v37
    %v108 = vpop.f32.mrb[0].mxu0
    %v109 = vadd.f32 0.0, %v108
    %v110 = vpop.f32.mrb[0].mxu0
    %111 = vmatprep.mubr.f32.mxu0 0.0
    %112 = vmatmul.mubr.f32.gmra.mrb[0].mxu0 %v40
    %v113 = vpop.f32.mrb[0].mxu0
    %v114 = vadd.f32 0.0, %v113
    %v115 = vpop.f32.mrb[0].mxu0
    %116 = vdwg.mxu0
    %vm117 = vcmask 130048
    %v119 = vsel %vm117, %v29, 0
    %v122 = vsel %vm117, %v30, 0
    %v125 = vsel %vm117, %v31, 0
    %127 = vmatprep.subr.mxu0 0.0
    %128 = vmatpush1.msra.mxu0 %v109
    %129 = vmatprep.subr.mxu0 0.0
    %130 = vmatpush1.msra.mxu0 %v114
    %131 = vmatprep.subr.mxu0 0.0
    %132 = vmatpush1.msra.mxu0 0.0
    %133 = vmatprep.subr.mxu0 0.0
    %134 = vmatpush1.msra.mxu0 0.0
    %135 = vmatprep.subr.mxu0 0.0
    %136 = vmatpush1.msra.mxu0 0.0
    %137 = vmatprep.subr.mxu0 0.0
    %138 = vmatpush1.msra.mxu0 0.0
    %139 = vmatprep.subr.mxu0 0.0
    %140 = vmatpush1.msra.mxu0 0.0
    %141 = vmatprep.subr.mxu0 0.0
    %142 = vmatpush1.msra.mxu0 0.0
    %143 = vmatprep.subr.mxu0 0.0
    %144 = vmatpush1.msra.mxu0 0.0
    %145 = vmatprep.subr.mxu0 0.0
    %146 = vmatpush1.msra.mxu0 0.0
    %147 = vmatprep.subr.mxu0 0.0
    %148 = vmatpush1.msra.mxu0 0.0
    %149 = vmatprep.subr.mxu0 0.0
    %150 = vmatpush1.msra.mxu0 0.0
    %151 = vmatprep.subr.mxu0 0.0
    %152 = vmatpush1.msra.mxu0 0.0
    %153 = vmatprep.subr.mxu0 0.0
    %154 = vmatpush1.msra.mxu0 0.0
    %155 = vmatprep.subr.mxu0 0.0
    %156 = vmatpush1.msra.mxu0 0.0
    %157 = vmatprep.subr.mxu0 0.0
    %158 = vmatpush1.msra.mxu0 0.0
    %159 = vmatprep.subr.mxu0 0.0
    %160 = vmatpush1.msra.mxu0 0.0
    %161 = vmatprep.subr.mxu0 0.0
    %162 = vmatpush1.msra.mxu0 0.0
    %163 = vmatprep.subr.mxu0 0.0
    %164 = vmatpush1.msra.mxu0 0.0
    %165 = vmatprep.subr.mxu0 0.0
    %166 = vmatpush1.msra.mxu0 0.0
    %167 = vmatprep.subr.mxu0 0.0
    %168 = vmatpush1.msra.mxu0 0.0
    %169 = vmatprep.subr.mxu0 0.0
    %170 = vmatpush1.msra.mxu0 0.0
    %171 = vmatprep.subr.mxu0 0.0
    %172 = vmatpush1.msra.mxu0 0.0
    %173 = vmatprep.subr.mxu0 0.0
    %174 = vmatpush1.msra.mxu0 0.0
    %175 = vmatprep.subr.mxu0 0.0
    %176 = vmatpush1.msra.mxu0 0.0
    %177 = vmatprep.subr.mxu0 0.0
    %178 = vmatpush1.msra.mxu0 0.0
    %179 = vmatprep.subr.mxu0 0.0
    %180 = vmatpush1.msra.mxu0 0.0
    %181 = vmatprep.subr.mxu0 0.0
    %182 = vmatpush1.msra.mxu0 0.0
    %183 = vmatprep.subr.mxu0 0.0
    %184 = vmatpush1.msra.mxu0 0.0
    %185 = vmatprep.subr.mxu0 0.0
    %186 = vmatpush1.msra.mxu0 0.0
    %187 = vmatprep.subr.mxu0 0.0
    %188 = vmatpush1.msra.mxu0 0.0
    %189 = vmatprep.subr.mxu0 0.0
    %190 = vmatpush1.msra.mxu0 0.0
    %191 = vmatprep.mubr.f32.mxu0 0.0
    %192 = vmatmul.mubr.f32.gmra.mrb[0].mxu0 %v119
    %v193 = vpop.f32.mrb[0].mxu0
    %v194 = vadd.f32 0.0, %v193
    %v195 = vpop.f32.mrb[0].mxu0
    %196 = vmatprep.mubr.f32.mxu0 0.0
    %197 = vmatmul.mubr.f32.gmra.mrb[0].mxu0 %v122
    %v198 = vpop.f32.mrb[0].mxu0
    %v199 = vadd.f32 0.0, %v198
    %v200 = vpop.f32.mrb[0].mxu0
    %201 = vmatprep.mubr.f32.mxu0 0.0
    %202 = vmatmul.mubr.f32.gmra.mrb[0].mxu0 %v125
    %v203 = vpop.f32.mrb[0].mxu0
    %v204 = vadd.f32 0.0, %v203
    %v205 = vpop.f32.mrb[0].mxu0
    %206 = vdwg.mxu0
    %207 = vst [vmem:[#allocation2] sm:$0xff] %v109
    %208 = vst [vmem:[#allocation2 + $0x8] sm:$0xff] %v114
    %209 = vst [vmem:[#allocation2 + $0x10] sm:$0xff] %v194
    %210 = vst [vmem:[#allocation2 + $0x18] sm:$0xff] %v199
    %211 = vst [vmem:[#allocation2 + $0x20] sm:$0xff] %v204
    %v212 = vld [vmem:[%s4] sm:$0xff]
    %v213 = vld [vmem:[%s4 + $0x8] sm:$0xff]
    %v214 = vld [vmem:[%s4 + $0x10] sm:$0xff]
    %v215 = vld [vmem:[%s4 + $0x18] sm:$0xff]
    %v216 = vld [vmem:[%s4 + $0x20] sm:$0xff]
    %v217 = vld [vmem:[%s3] sm:$0xff]
    %v218 = vld [vmem:[%s3 + $0x8] sm:$0xff]
    %v219 = vld [vmem:[%s3 + $0x10] sm:$0xff]
    %v220 = vld [vmem:[%s3 + $0x18] sm:$0xff]
    %v221 = vld [vmem:[%s3 + $0x20] sm:$0xff]
    %v222 = vld [vmem:[#allocation2] sm:$0xff]
    %v223 = vld [vmem:[#allocation2 + $0x8] sm:$0xff]
    %v224 = vld [vmem:[#allocation2 + $0x10] sm:$0xff]
    %v225 = vld [vmem:[#allocation2 + $0x18] sm:$0xff]
    %v226 = vld [vmem:[#allocation2 + $0x20] sm:$0xff]
    %v227 = vld [vmem:[%s5] sm:$0x1]
    %229 = vset.pattern.permute.xlu0 0
    %230 = vperm.xlu0 %229, %v212
    %v231 = vpop.permute.xlu0 %230
    %234 = vset.pattern.permute.xlu0 0
    %235 = vperm.xlu0 %234, %v213
    %v236 = vpop.permute.xlu0 %235
    %239 = vset.pattern.permute.xlu0 0
    %240 = vperm.xlu0 %239, %v214
    %v241 = vpop.permute.xlu0 %240
    %244 = vset.pattern.permute.xlu0 0
    %245 = vperm.xlu0 %244, %v215
    %v246 = vpop.permute.xlu0 %245
    %249 = vset.pattern.permute.xlu0 0
    %250 = vperm.xlu0 %249, %v216
    %v251 = vpop.permute.xlu0 %250
    %v254 = vlaneseq
    %v255 = vshrl.u32 %v254, 7
    %v256 = vsub.s32 0, %v255
    %v257 = vrot.slane %v227, %v256
    %v259 = vmul.f32 %v231, %v257
    %v260 = vmul.f32 %v236, %v257
    %v261 = vmul.f32 %v241, %v257
    %v262 = vmul.f32 %v246, %v257
    %v263 = vmul.f32 %v251, %v257
    %vm264 = vcmask 326656
    %v266 = vsel %vm264, %v217, 0
    %v269 = vsel %vm264, %v218, 0
    %v272 = vsel %vm264, %v219, 0
    %v275 = vsel %vm264, %v220, 0
    %v278 = vsel %vm264, %v221, 0
    %280 = vmatprep.subr.mxu0 0.0
    %281 = vmatpush1.msra.mxu0 %v222
    %282 = vmatprep.subr.mxu0 0.0
    %283 = vmatpush1.msra.mxu0 %v223
    %284 = vmatprep.subr.mxu0 0.0
    %285 = vmatpush1.msra.mxu0 %v224
    %286 = vmatprep.subr.mxu0 0.0
    %287 = vmatpush1.msra.mxu0 %v225
    %288 = vmatprep.subr.mxu0 0.0
    %289 = vmatpush1.msra.mxu0 %v226
    %290 = vmatprep.subr.mxu0 0.0
    %291 = vmatpush1.msra.mxu0 0.0
    %292 = vmatprep.subr.mxu0 0.0
    %293 = vmatpush1.msra.mxu0 0.0
    %294 = vmatprep.subr.mxu0 0.0
    %295 = vmatpush1.msra.mxu0 0.0
    %296 = vmatprep.subr.mxu0 0.0
    %297 = vmatpush1.msra.mxu0 0.0
    %298 = vmatprep.subr.mxu0 0.0
    %299 = vmatpush1.msra.mxu0 0.0
    %300 = vmatprep.subr.mxu0 0.0
    %301 = vmatpush1.msra.mxu0 0.0
    %302 = vmatprep.subr.mxu0 0.0
    %303 = vmatpush1.msra.mxu0 0.0
    %304 = vmatprep.subr.mxu0 0.0
    %305 = vmatpush1.msra.mxu0 0.0
    %306 = vmatprep.subr.mxu0 0.0
    %307 = vmatpush1.msra.mxu0 0.0
    %308 = vmatprep.subr.mxu0 0.0
    %309 = vmatpush1.msra.mxu0 0.0
    %310 = vmatprep.subr.mxu0 0.0
    %311 = vmatpush1.msra.mxu0 0.0
    %312 = vmatprep.subr.mxu0 0.0
    %313 = vmatpush1.msra.mxu0 0.0
    %314 = vmatprep.subr.mxu0 0.0
    %315 = vmatpush1.msra.mxu0 0.0
    %316 = vmatprep.subr.mxu0 0.0
    %317 = vmatpush1.msra.mxu0 0.0
    %318 = vmatprep.subr.mxu0 0.0
    %319 = vmatpush1.msra.mxu0 0.0
    %320 = vmatprep.subr.mxu0 0.0
    %321 = vmatpush1.msra.mxu0 0.0
    %322 = vmatprep.subr.mxu0 0.0
    %323 = vmatpush1.msra.mxu0 0.0
    %324 = vmatprep.subr.mxu0 0.0
    %325 = vmatpush1.msra.mxu0 0.0
    %326 = vmatprep.subr.mxu0 0.0
    %327 = vmatpush1.msra.mxu0 0.0
    %328 = vmatprep.subr.mxu0 0.0
    %329 = vmatpush1.msra.mxu0 0.0
    %330 = vmatprep.subr.mxu0 0.0
    %331 = vmatpush1.msra.mxu0 0.0
    %332 = vmatprep.subr.mxu0 0.0
    %333 = vmatpush1.msra.mxu0 0.0
    %334 = vmatprep.subr.mxu0 0.0
    %335 = vmatpush1.msra.mxu0 0.0
    %336 = vmatprep.subr.mxu0 0.0
    %337 = vmatpush1.msra.mxu0 0.0
    %338 = vmatprep.subr.mxu0 0.0
    %339 = vmatpush1.msra.mxu0 0.0
    %340 = vmatprep.subr.mxu0 0.0
    %341 = vmatpush1.msra.mxu0 0.0
    %342 = vmatprep.subr.mxu0 0.0
    %343 = vmatpush1.msra.mxu0 0.0
    %344 = vmatprep.mubr.f32.mxu0 0.0
    %345 = vmatmul.mubr.f32.gmra.mrb[0].mxu0 %v266
    %v346 = vpop.f32.mrb[0].mxu0
    %v347 = vadd.f32 %v259, %v346
    %v348 = vpop.f32.mrb[0].mxu0
    %349 = vmatprep.mubr.f32.mxu0 0.0
    %350 = vmatmul.mubr.f32.gmra.mrb[0].mxu0 %v269
    %v351 = vpop.f32.mrb[0].mxu0
    %v352 = vadd.f32 %v260, %v351
    %v353 = vpop.f32.mrb[0].mxu0
    %354 = vmatprep.mubr.f32.mxu0 0.0
    %355 = vmatmul.mubr.f32.gmra.mrb[0].mxu0 %v272
    %v356 = vpop.f32.mrb[0].mxu0
    %v357 = vadd.f32 %v261, %v356
    %v358 = vpop.f32.mrb[0].mxu0
    %359 = vmatprep.mubr.f32.mxu0 0.0
    %360 = vmatmul.mubr.f32.gmra.mrb[0].mxu0 %v275
    %v361 = vpop.f32.mrb[0].mxu0
    %v362 = vadd.f32 %v262, %v361
    %v363 = vpop.f32.mrb[0].mxu0
    %364 = vmatprep.mubr.f32.mxu0 0.0
    %365 = vmatmul.mubr.f32.gmra.mrb[0].mxu0 %v278
    %v366 = vpop.f32.mrb[0].mxu0
    %v367 = vadd.f32 %v263, %v366
    %v368 = vpop.f32.mrb[0].mxu0
    %369 = vdwg.mxu0
    %370 = vst [vmem:[#allocation3] sm:$0xff] %v347
    %371 = vst [vmem:[#allocation3 + $0x8] sm:$0xff] %v352
    %372 = vst [vmem:[#allocation3 + $0x10] sm:$0xff] %v357
    %373 = vst [vmem:[#allocation3 + $0x18] sm:$0xff] %v362
    %374 = vst [vmem:[#allocation3 + $0x20] sm:$0xff] %v367
    %v375 = vld [vmem:[%s6] sm:$0xff]
    %v376 = vld [vmem:[%s6 + $0x8] sm:$0xff]
    %v377 = vld [vmem:[%s6 + $0x10] sm:$0xff]
    %v378 = vld [vmem:[%s6 + $0x18] sm:$0xff]
    %v379 = vld [vmem:[%s6 + $0x20] sm:$0xff]
    %v380 = vld [vmem:[%s6 + $0x28] sm:$0xff]
    %v381 = vld [vmem:[%s6 + $0x30] sm:$0xff]
    %v382 = vld [vmem:[%s6 + $0x38] sm:$0xff]
    %v383 = vld [vmem:[%s6 + $0x40] sm:$0xff]
    %v384 = vld [vmem:[%s6 + $0x48] sm:$0xff]
    %v385 = vld [vmem:[%s6 + $0x50] sm:$0xff]
    %v386 = vld [vmem:[%s6 + $0x58] sm:$0xff]
    %v387 = vld [vmem:[%s6 + $0x60] sm:$0xff]
    %v388 = vld [vmem:[%s6 + $0x68] sm:$0xff]
    %v389 = vld [vmem:[%s6 + $0x70] sm:$0xff]
    %v390 = vld [vmem:[%s6 + $0x78] sm:$0xff]
    %v391 = vld [vmem:[#allocation3] sm:$0xff]
    %v392 = vld [vmem:[#allocation3 + $0x8] sm:$0xff]
    %v393 = vld [vmem:[#allocation3 + $0x10] sm:$0xff]
    %v394 = vld [vmem:[#allocation3 + $0x18] sm:$0xff]
    %v395 = vld [vmem:[#allocation3 + $0x20] sm:$0xff]
    %396 = vmatprep.subr.mxu0 0.0
    %397 = vmatpush1.msra.mxu0 %v393
    %398 = vmatprep.subr.mxu0 0.0
    %399 = vmatpush1.msra.mxu0 %v394
    %400 = vmatprep.subr.mxu0 0.0
    %401 = vmatpush1.msra.mxu0 %v395
    %402 = vmatprep.subr.mxu0 0.0
    %403 = vmatpush1.msra.mxu0 0.0
    %404 = vmatprep.subr.mxu0 0.0
    %405 = vmatpush1.msra.mxu0 0.0
    %406 = vmatprep.subr.mxu0 0.0
    %407 = vmatpush1.msra.mxu0 0.0
    %408 = vmatprep.subr.mxu0 0.0
    %409 = vmatpush1.msra.mxu0 0.0
    %410 = vmatprep.subr.mxu0 0.0
    %411 = vmatpush1.msra.mxu0 0.0
    %412 = vmatprep.subr.mxu0 0.0
    %413 = vmatpush1.msra.mxu0 0.0
    %414 = vmatprep.subr.mxu0 0.0
    %415 = vmatpush1.msra.mxu0 0.0
    %416 = vmatprep.subr.mxu0 0.0
    %417 = vmatpush1.msra.mxu0 0.0
    %418 = vmatprep.subr.mxu0 0.0
    %419 = vmatpush1.msra.mxu0 0.0
    %420 = vmatprep.subr.mxu0 0.0
    %421 = vmatpush1.msra.mxu0 0.0
    %422 = vmatprep.subr.mxu0 0.0
    %423 = vmatpush1.msra.mxu0 0.0
    %424 = vmatprep.subr.mxu0 0.0
    %425 = vmatpush1.msra.mxu0 0.0
    %426 = vmatprep.subr.mxu0 0.0
    %427 = vmatpush1.msra.mxu0 0.0
    %428 = vmatprep.subr.mxu0 0.0
    %429 = vmatpush1.msra.mxu0 0.0
    %430 = vmatprep.subr.mxu0 0.0
    %431 = vmatpush1.msra.mxu0 0.0
    %432 = vmatprep.subr.mxu0 0.0
    %433 = vmatpush1.msra.mxu0 0.0
    %434 = vmatprep.subr.mxu0 0.0
    %435 = vmatpush1.msra.mxu0 0.0
    %436 = vmatprep.subr.mxu0 0.0
    %437 = vmatpush1.msra.mxu0 0.0
    %438 = vmatprep.subr.mxu0 0.0
    %439 = vmatpush1.msra.mxu0 0.0
    %440 = vmatprep.subr.mxu0 0.0
    %441 = vmatpush1.msra.mxu0 0.0
    %442 = vmatprep.subr.mxu0 0.0
    %443 = vmatpush1.msra.mxu0 0.0
    %444 = vmatprep.subr.mxu0 0.0
    %445 = vmatpush1.msra.mxu0 0.0
    %446 = vmatprep.subr.mxu0 0.0
    %447 = vmatpush1.msra.mxu0 0.0
    %448 = vmatprep.subr.mxu0 0.0
    %449 = vmatpush1.msra.mxu0 0.0
    %450 = vmatprep.subr.mxu0 0.0
    %451 = vmatpush1.msra.mxu0 0.0
    %452 = vmatprep.subr.mxu0 0.0
    %453 = vmatpush1.msra.mxu0 0.0
    %454 = vmatprep.subr.mxu0 0.0
    %455 = vmatpush1.msra.mxu0 0.0
    %456 = vmatprep.subr.mxu0 0.0
    %457 = vmatpush1.msra.mxu0 0.0
    %458 = vmatprep.subr.mxu0 0.0
    %459 = vmatpush1.msra.mxu0 0.0
    %460 = vmatprep.mubr.f32.mxu0 0.0
    %461 = vmatmul.mubr.f32.gmra.mrb[0].mxu0 %v37
    %v462 = vpop.f32.mrb[0].mxu0
    %v463 = vadd.f32 0.0, %v462
    %v464 = vpop.f32.mrb[0].mxu0
    %465 = vmatprep.mubr.f32.mxu0 0.0
    %466 = vmatmul.mubr.f32.gmra.mrb[0].mxu0 %v40
    %v467 = vpop.f32.mrb[0].mxu0
    %v468 = vadd.f32 0.0, %v467
    %v469 = vpop.f32.mrb[0].mxu0
    %470 = vdwg.mxu0
    %471 = vmatprep.subr.mxu0 0.0
    %472 = vmatpush1.msra.mxu0 %v391
    %473 = vmatprep.subr.mxu0 0.0
    %474 = vmatpush1.msra.mxu0 %v392
    %475 = vmatprep.subr.mxu0 0.0
    %476 = vmatpush1.msra.mxu0 0.0
    %477 = vmatprep.subr.mxu0 0.0
    %478 = vmatpush1.msra.mxu0 0.0
    %479 = vmatprep.subr.mxu0 0.0
    %480 = vmatpush1.msra.mxu0 0.0
    %481 = vmatprep.subr.mxu0 0.0
    %482 = vmatpush1.msra.mxu0 0.0
    %483 = vmatprep.subr.mxu0 0.0
    %484 = vmatpush1.msra.mxu0 0.0
    %485 = vmatprep.subr.mxu0 0.0
    %486 = vmatpush1.msra.mxu0 0.0
    %487 = vmatprep.subr.mxu0 0.0
    %488 = vmatpush1.msra.mxu0 0.0
    %489 = vmatprep.subr.mxu0 0.0
    %490 = vmatpush1.msra.mxu0 0.0
    %491 = vmatprep.subr.mxu0 0.0
    %492 = vmatpush1.msra.mxu0 0.0
    %493 = vmatprep.subr.mxu0 0.0
    %494 = vmatpush1.msra.mxu0 0.0
    %495 = vmatprep.subr.mxu0 0.0
    %496 = vmatpush1.msra.mxu0 0.0
    %497 = vmatprep.subr.mxu0 0.0
    %498 = vmatpush1.msra.mxu0 0.0
    %499 = vmatprep.subr.mxu0 0.0
    %500 = vmatpush1.msra.mxu0 0.0
    %501 = vmatprep.subr.mxu0 0.0
    %502 = vmatpush1.msra.mxu0 0.0
    %503 = vmatprep.subr.mxu0 0.0
    %504 = vmatpush1.msra.mxu0 0.0
    %505 = vmatprep.subr.mxu0 0.0
    %506 = vmatpush1.msra.mxu0 0.0
    %507 = vmatprep.subr.mxu0 0.0
    %508 = vmatpush1.msra.mxu0 0.0
    %509 = vmatprep.subr.mxu0 0.0
    %510 = vmatpush1.msra.mxu0 0.0
    %511 = vmatprep.subr.mxu0 0.0
    %512 = vmatpush1.msra.mxu0 0.0
    %513 = vmatprep.subr.mxu0 0.0
    %514 = vmatpush1.msra.mxu0 0.0
    %515 = vmatprep.subr.mxu0 0.0
    %516 = vmatpush1.msra.mxu0 0.0
    %517 = vmatprep.subr.mxu0 0.0
    %518 = vmatpush1.msra.mxu0 0.0
    %519 = vmatprep.subr.mxu0 0.0
    %520 = vmatpush1.msra.mxu0 0.0
    %521 = vmatprep.subr.mxu0 0.0
    %522 = vmatpush1.msra.mxu0 0.0
    %523 = vmatprep.subr.mxu0 0.0
    %524 = vmatpush1.msra.mxu0 0.0
    %525 = vmatprep.subr.mxu0 0.0
    %526 = vmatpush1.msra.mxu0 0.0
    %527 = vmatprep.subr.mxu0 0.0
    %528 = vmatpush1.msra.mxu0 0.0
    %529 = vmatprep.subr.mxu0 0.0
    %530 = vmatpush1.msra.mxu0 0.0
    %531 = vmatprep.subr.mxu0 0.0
    %532 = vmatpush1.msra.mxu0 0.0
    %533 = vmatprep.subr.mxu0 0.0
    %534 = vmatpush1.msra.mxu0 0.0
    %535 = vmatprep.mubr.f32.mxu0 0.0
    %536 = vmatmul.mubr.f32.gmra.mrb[0].mxu0 %v119
    %v537 = vpop.f32.mrb[0].mxu0
    %v538 = vadd.f32 0.0, %v537
    %v539 = vpop.f32.mrb[0].mxu0
    %540 = vmatprep.mubr.f32.mxu0 0.0
    %541 = vmatmul.mubr.f32.gmra.mrb[0].mxu0 %v122
    %v542 = vpop.f32.mrb[0].mxu0
    %v543 = vadd.f32 0.0, %v542
    %v544 = vpop.f32.mrb[0].mxu0
    %545 = vmatprep.mubr.f32.mxu0 0.0
    %546 = vmatmul.mubr.f32.gmra.mrb[0].mxu0 %v125
    %v547 = vpop.f32.mrb[0].mxu0
    %v548 = vadd.f32 0.0, %v547
    %v549 = vpop.f32.mrb[0].mxu0
    %550 = vdwg.mxu0
    %551 = vmatprep.subr.mxu0 0.0
    %552 = vmatpush1.msra.mxu0 %v375
    %553 = vmatprep.subr.mxu0 0.0
    %554 = vmatpush1.msra.mxu0 %v376
    %555 = vmatprep.subr.mxu0 0.0
    %556 = vmatpush1.msra.mxu0 %v377
    %557 = vmatprep.subr.mxu0 0.0
    %558 = vmatpush1.msra.mxu0 %v378
    %559 = vmatprep.subr.mxu0 0.0
    %560 = vmatpush1.msra.mxu0 %v379
    %561 = vmatprep.subr.mxu0 0.0
    %562 = vmatpush1.msra.mxu0 %v380
    %563 = vmatprep.subr.mxu0 0.0
    %564 = vmatpush1.msra.mxu0 %v381
    %565 = vmatprep.subr.mxu0 0.0
    %566 = vmatpush1.msra.mxu0 %v382
    %567 = vmatprep.subr.mxu0 0.0
    %568 = vmatpush1.msra.mxu0 %v383
    %569 = vmatprep.subr.mxu0 0.0
    %570 = vmatpush1.msra.mxu0 %v384
    %571 = vmatprep.subr.mxu0 0.0
    %572 = vmatpush1.msra.mxu0 %v385
    %573 = vmatprep.subr.mxu0 0.0
    %574 = vmatpush1.msra.mxu0 %v386
    %575 = vmatprep.subr.mxu0 0.0
    %576 = vmatpush1.msra.mxu0 %v387
    %577 = vmatprep.subr.mxu0 0.0
    %578 = vmatpush1.msra.mxu0 %v388
    %579 = vmatprep.subr.mxu0 0.0
    %580 = vmatpush1.msra.mxu0 %v389
    %581 = vmatprep.subr.mxu0 0.0
    %582 = vmatpush1.msra.mxu0 %v390
    %583 = vmatprep.subr.mxu0 0.0
    %584 = vmatpush1.msra.mxu0 0.0
    %585 = vmatprep.subr.mxu0 0.0
    %586 = vmatpush1.msra.mxu0 0.0
    %587 = vmatprep.subr.mxu0 0.0
    %588 = vmatpush1.msra.mxu0 0.0
    %589 = vmatprep.subr.mxu0 0.0
    %590 = vmatpush1.msra.mxu0 0.0
    %591 = vmatprep.subr.mxu0 0.0
    %592 = vmatpush1.msra.mxu0 0.0
    %593 = vmatprep.subr.mxu0 0.0
    %594 = vmatpush1.msra.mxu0 0.0
    %595 = vmatprep.subr.mxu0 0.0
    %596 = vmatpush1.msra.mxu0 0.0
    %597 = vmatprep.subr.mxu0 0.0
    %598 = vmatpush1.msra.mxu0 0.0
    %599 = vmatprep.subr.mxu0 0.0
    %600 = vmatpush1.msra.mxu0 0.0
    %601 = vmatprep.subr.mxu0 0.0
    %602 = vmatpush1.msra.mxu0 0.0
    %603 = vmatprep.subr.mxu0 0.0
    %604 = vmatpush1.msra.mxu0 0.0
    %605 = vmatprep.subr.mxu0 0.0
    %606 = vmatpush1.msra.mxu0 0.0
    %607 = vmatprep.subr.mxu0 0.0
    %608 = vmatpush1.msra.mxu0 0.0
    %609 = vmatprep.subr.mxu0 0.0
    %610 = vmatpush1.msra.mxu0 0.0
    %611 = vmatprep.subr.mxu0 0.0
    %612 = vmatpush1.msra.mxu0 0.0
    %613 = vmatprep.subr.mxu0 0.0
    %614 = vmatpush1.msra.mxu0 0.0
    %615 = vmatprep.mubr.f32.mxu0 0.0
    %616 = vmatmul.mubr.f32.gmra.mrb[0].mxu0 %v463
    %v617 = vpop.f32.mrb[0].mxu0
    %v618 = vadd.f32 0.0, %v617
    %v619 = vpop.f32.mrb[0].mxu0
    %620 = vmatprep.mubr.f32.mxu0 0.0
    %621 = vmatmul.mubr.f32.gmra.mrb[0].mxu0 %v468
    %v622 = vpop.f32.mrb[0].mxu0
    %v623 = vadd.f32 0.0, %v622
    %v624 = vpop.f32.mrb[0].mxu0
    %625 = vdwg.mxu0
    %626 = vmatprep.subr.mxu0 0.0
    %627 = vmatpush1.msra.mxu0 %v375
    %628 = vmatprep.subr.mxu0 0.0
    %629 = vmatpush1.msra.mxu0 %v376
    %630 = vmatprep.subr.mxu0 0.0
    %631 = vmatpush1.msra.mxu0 %v377
    %632 = vmatprep.subr.mxu0 0.0
    %633 = vmatpush1.msra.mxu0 %v378
    %634 = vmatprep.subr.mxu0 0.0
    %635 = vmatpush1.msra.mxu0 %v379
    %636 = vmatprep.subr.mxu0 0.0
    %637 = vmatpush1.msra.mxu0 %v380
    %638 = vmatprep.subr.mxu0 0.0
    %639 = vmatpush1.msra.mxu0 %v381
    %640 = vmatprep.subr.mxu0 0.0
    %641 = vmatpush1.msra.mxu0 %v382
    %642 = vmatprep.subr.mxu0 0.0
    %643 = vmatpush1.msra.mxu0 %v383
    %644 = vmatprep.subr.mxu0 0.0
    %645 = vmatpush1.msra.mxu0 %v384
    %646 = vmatprep.subr.mxu0 0.0
    %647 = vmatpush1.msra.mxu0 %v385
    %648 = vmatprep.subr.mxu0 0.0
    %649 = vmatpush1.msra.mxu0 %v386
    %650 = vmatprep.subr.mxu0 0.0
    %651 = vmatpush1.msra.mxu0 %v387
    %652 = vmatprep.subr.mxu0 0.0
    %653 = vmatpush1.msra.mxu0 %v388
    %654 = vmatprep.subr.mxu0 0.0
    %655 = vmatpush1.msra.mxu0 %v389
    %656 = vmatprep.subr.mxu0 0.0
    %657 = vmatpush1.msra.mxu0 %v390
    %658 = vmatprep.subr.mxu0 0.0
    %659 = vmatpush1.msra.mxu0 0.0
    %660 = vmatprep.subr.mxu0 0.0
    %661 = vmatpush1.msra.mxu0 0.0
    %662 = vmatprep.subr.mxu0 0.0
    %663 = vmatpush1.msra.mxu0 0.0
    %664 = vmatprep.subr.mxu0 0.0
    %665 = vmatpush1.msra.mxu0 0.0
    %666 = vmatprep.subr.mxu0 0.0
    %667 = vmatpush1.msra.mxu0 0.0
    %668 = vmatprep.subr.mxu0 0.0
    %669 = vmatpush1.msra.mxu0 0.0
    %670 = vmatprep.subr.mxu0 0.0
    %671 = vmatpush1.msra.mxu0 0.0
    %672 = vmatprep.subr.mxu0 0.0
    %673 = vmatpush1.msra.mxu0 0.0
    %674 = vmatprep.subr.mxu0 0.0
    %675 = vmatpush1.msra.mxu0 0.0
    %676 = vmatprep.subr.mxu0 0.0
    %677 = vmatpush1.msra.mxu0 0.0
    %678 = vmatprep.subr.mxu0 0.0
    %679 = vmatpush1.msra.mxu0 0.0
    %680 = vmatprep.subr.mxu0 0.0
    %681 = vmatpush1.msra.mxu0 0.0
    %682 = vmatprep.subr.mxu0 0.0
    %683 = vmatpush1.msra.mxu0 0.0
    %684 = vmatprep.subr.mxu0 0.0
    %685 = vmatpush1.msra.mxu0 0.0
    %686 = vmatprep.subr.mxu0 0.0
    %687 = vmatpush1.msra.mxu0 0.0
    %688 = vmatprep.subr.mxu0 0.0
    %689 = vmatpush1.msra.mxu0 0.0
    %690 = vmatprep.mubr.f32.mxu0 0.0
    %691 = vmatmul.mubr.f32.gmra.mrb[0].mxu0 %v538
    %v692 = vpop.f32.mrb[0].mxu0
    %v693 = vadd.f32 0.0, %v692
    %v694 = vpop.f32.mrb[0].mxu0
    %695 = vmatprep.mubr.f32.mxu0 0.0
    %696 = vmatmul.mubr.f32.gmra.mrb[0].mxu0 %v543
    %v697 = vpop.f32.mrb[0].mxu0
    %v698 = vadd.f32 0.0, %v697
    %v699 = vpop.f32.mrb[0].mxu0
    %700 = vmatprep.mubr.f32.mxu0 0.0
    %701 = vmatmul.mubr.f32.gmra.mrb[0].mxu0 %v548
    %v702 = vpop.f32.mrb[0].mxu0
    %v703 = vadd.f32 0.0, %v702
    %v704 = vpop.f32.mrb[0].mxu0
    %705 = vdwg.mxu0
    %v706 = vmax.f32 %v618, 0.0
    %v707 = vmax.f32 %v623, 0.0
    %v708 = vmax.f32 %v693, 0.0
    %v709 = vmax.f32 %v698, 0.0
    %v710 = vmax.f32 %v703, 0.0
    %711 = vst [vmem:[#allocation3] sm:$0xff] %v706
    %712 = vst [vmem:[#allocation3 + $0x8] sm:$0xff] %v707
    %713 = vst [vmem:[#allocation3 + $0x10] sm:$0xff] %v708
    %714 = vst [vmem:[#allocation3 + $0x18] sm:$0xff] %v709
    %715 = vst [vmem:[#allocation3 + $0x20] sm:$0xff] %v710
    %s716 = scalar_lea.vmem %s6, 128
    %v717 = vld [vmem:[%s716] sm:$0xff]
    %v718 = vld [vmem:[%s716 + $0x8] sm:$0xff]
    %v719 = vld [vmem:[%s716 + $0x10] sm:$0xff]
    %v720 = vld [vmem:[%s716 + $0x18] sm:$0xff]
    %v721 = vld [vmem:[%s716 + $0x20] sm:$0xff]
    %v722 = vld [vmem:[%s716 + $0x28] sm:$0xff]
    %v723 = vld [vmem:[%s716 + $0x30] sm:$0xff]
    %v724 = vld [vmem:[%s716 + $0x38] sm:$0xff]
    %v725 = vld [vmem:[%s716 + $0x40] sm:$0xff]
    %v726 = vld [vmem:[%s716 + $0x48] sm:$0xff]
    %v727 = vld [vmem:[%s716 + $0x50] sm:$0xff]
    %v728 = vld [vmem:[%s716 + $0x58] sm:$0xff]
    %v729 = vld [vmem:[%s716 + $0x60] sm:$0xff]
    %v730 = vld [vmem:[%s716 + $0x68] sm:$0xff]
    %v731 = vld [vmem:[%s716 + $0x70] sm:$0xff]
    %v732 = vld [vmem:[%s716 + $0x78] sm:$0xff]
    %v733 = vld [vmem:[#allocation3] sm:$0xff]
    %v734 = vld [vmem:[#allocation3 + $0x8] sm:$0xff]
    %v735 = vld [vmem:[#allocation3 + $0x10] sm:$0xff]
    %v736 = vld [vmem:[#allocation3 + $0x18] sm:$0xff]
    %v737 = vld [vmem:[#allocation3 + $0x20] sm:$0xff]
    %738 = vmatprep.subr.mxu0 0.0
    %739 = vmatpush1.msra.mxu0 %v735
    %740 = vmatprep.subr.mxu0 0.0
    %741 = vmatpush1.msra.mxu0 %v736
    %742 = vmatprep.subr.mxu0 0.0
    %743 = vmatpush1.msra.mxu0 %v737
    %744 = vmatprep.subr.mxu0 0.0
    %745 = vmatpush1.msra.mxu0 0.0
    %746 = vmatprep.subr.mxu0 0.0
    %747 = vmatpush1.msra.mxu0 0.0
    %748 = vmatprep.subr.mxu0 0.0
    %749 = vmatpush1.msra.mxu0 0.0
    %750 = vmatprep.subr.mxu0 0.0
    %751 = vmatpush1.msra.mxu0 0.0
    %752 = vmatprep.subr.mxu0 0.0
    %753 = vmatpush1.msra.mxu0 0.0
    %754 = vmatprep.subr.mxu0 0.0
    %755 = vmatpush1.msra.mxu0 0.0
    %756 = vmatprep.subr.mxu0 0.0
    %757 = vmatpush1.msra.mxu0 0.0
    %758 = vmatprep.subr.mxu0 0.0
    %759 = vmatpush1.msra.mxu0 0.0
    %760 = vmatprep.subr.mxu0 0.0
    %761 = vmatpush1.msra.mxu0 0.0
    %762 = vmatprep.subr.mxu0 0.0
    %763 = vmatpush1.msra.mxu0 0.0
    %764 = vmatprep.subr.mxu0 0.0
    %765 = vmatpush1.msra.mxu0 0.0
    %766 = vmatprep.subr.mxu0 0.0
    %767 = vmatpush1.msra.mxu0 0.0
    %768 = vmatprep.subr.mxu0 0.0
    %769 = vmatpush1.msra.mxu0 0.0
    %770 = vmatprep.subr.mxu0 0.0
    %771 = vmatpush1.msra.mxu0 0.0
    %772 = vmatprep.subr.mxu0 0.0
    %773 = vmatpush1.msra.mxu0 0.0
    %774 = vmatprep.subr.mxu0 0.0
    %775 = vmatpush1.msra.mxu0 0.0
    %776 = vmatprep.subr.mxu0 0.0
    %777 = vmatpush1.msra.mxu0 0.0
    %778 = vmatprep.subr.mxu0 0.0
    %779 = vmatpush1.msra.mxu0 0.0
    %780 = vmatprep.subr.mxu0 0.0
    %781 = vmatpush1.msra.mxu0 0.0
    %782 = vmatprep.subr.mxu0 0.0
    %783 = vmatpush1.msra.mxu0 0.0
    %784 = vmatprep.subr.mxu0 0.0
    %785 = vmatpush1.msra.mxu0 0.0
    %786 = vmatprep.subr.mxu0 0.0
    %787 = vmatpush1.msra.mxu0 0.0
    %788 = vmatprep.subr.mxu0 0.0
    %789 = vmatpush1.msra.mxu0 0.0
    %790 = vmatprep.subr.mxu0 0.0
    %791 = vmatpush1.msra.mxu0 0.0
    %792 = vmatprep.subr.mxu0 0.0
    %793 = vmatpush1.msra.mxu0 0.0
    %794 = vmatprep.subr.mxu0 0.0
    %795 = vmatpush1.msra.mxu0 0.0
    %796 = vmatprep.subr.mxu0 0.0
    %797 = vmatpush1.msra.mxu0 0.0
    %798 = vmatprep.subr.mxu0 0.0
    %799 = vmatpush1.msra.mxu0 0.0
    %800 = vmatprep.subr.mxu0 0.0
    %801 = vmatpush1.msra.mxu0 0.0
    %802 = vmatprep.mubr.f32.mxu0 0.0
    %803 = vmatmul.mubr.f32.gmra.mrb[0].mxu0 %v37
    %v804 = vpop.f32.mrb[0].mxu0
    %v805 = vadd.f32 0.0, %v804
    %v806 = vpop.f32.mrb[0].mxu0
    %807 = vmatprep.mubr.f32.mxu0 0.0
    %808 = vmatmul.mubr.f32.gmra.mrb[0].mxu0 %v40
    %v809 = vpop.f32.mrb[0].mxu0
    %v810 = vadd.f32 0.0, %v809
    %v811 = vpop.f32.mrb[0].mxu0
    %812 = vdwg.mxu0
    %813 = vmatprep.subr.mxu0 0.0
    %814 = vmatpush1.msra.mxu0 %v733
    %815 = vmatprep.subr.mxu0 0.0
    %816 = vmatpush1.msra.mxu0 %v734
    %817 = vmatprep.subr.mxu0 0.0
    %818 = vmatpush1.msra.mxu0 0.0
    %819 = vmatprep.subr.mxu0 0.0
    %820 = vmatpush1.msra.mxu0 0.0
    %821 = vmatprep.subr.mxu0 0.0
    %822 = vmatpush1.msra.mxu0 0.0
    %823 = vmatprep.subr.mxu0 0.0
    %824 = vmatpush1.msra.mxu0 0.0
    %825 = vmatprep.subr.mxu0 0.0
    %826 = vmatpush1.msra.mxu0 0.0
    %827 = vmatprep.subr.mxu0 0.0
    %828 = vmatpush1.msra.mxu0 0.0
    %829 = vmatprep.subr.mxu0 0.0
    %830 = vmatpush1.msra.mxu0 0.0
    %831 = vmatprep.subr.mxu0 0.0
    %832 = vmatpush1.msra.mxu0 0.0
    %833 = vmatprep.subr.mxu0 0.0
    %834 = vmatpush1.msra.mxu0 0.0
    %835 = vmatprep.subr.mxu0 0.0
    %836 = vmatpush1.msra.mxu0 0.0
    %837 = vmatprep.subr.mxu0 0.0
    %838 = vmatpush1.msra.mxu0 0.0
    %839 = vmatprep.subr.mxu0 0.0
    %840 = vmatpush1.msra.mxu0 0.0
    %841 = vmatprep.subr.mxu0 0.0
    %842 = vmatpush1.msra.mxu0 0.0
    %843 = vmatprep.subr.mxu0 0.0
    %844 = vmatpush1.msra.mxu0 0.0
    %845 = vmatprep.subr.mxu0 0.0
    %846 = vmatpush1.msra.mxu0 0.0
    %847 = vmatprep.subr.mxu0 0.0
    %848 = vmatpush1.msra.mxu0 0.0
    %849 = vmatprep.subr.mxu0 0.0
    %850 = vmatpush1.msra.mxu0 0.0
    %851 = vmatprep.subr.mxu0 0.0
    %852 = vmatpush1.msra.mxu0 0.0
    %853 = vmatprep.subr.mxu0 0.0
    %854 = vmatpush1.msra.mxu0 0.0
    %855 = vmatprep.subr.mxu0 0.0
    %856 = vmatpush1.msra.mxu0 0.0
    %857 = vmatprep.subr.mxu0 0.0
    %858 = vmatpush1.msra.mxu0 0.0
    %859 = vmatprep.subr.mxu0 0.0
    %860 = vmatpush1.msra.mxu0 0.0
    %861 = vmatprep.subr.mxu0 0.0
    %862 = vmatpush1.msra.mxu0 0.0
    %863 = vmatprep.subr.mxu0 0.0
    %864 = vmatpush1.msra.mxu0 0.0
    %865 = vmatprep.subr.mxu0 0.0
    %866 = vmatpush1.msra.mxu0 0.0
    %867 = vmatprep.subr.mxu0 0.0
    %868 = vmatpush1.msra.mxu0 0.0
    %869 = vmatprep.subr.mxu0 0.0
    %870 = vmatpush1.msra.mxu0 0.0
    %871 = vmatprep.subr.mxu0 0.0
    %872 = vmatpush1.msra.mxu0 0.0
    %873 = vmatprep.subr.mxu0 0.0
    %874 = vmatpush1.msra.mxu0 0.0
    %875 = vmatprep.subr.mxu0 0.0
    %876 = vmatpush1.msra.mxu0 0.0
    %877 = vmatprep.mubr.f32.mxu0 0.0
    %878 = vmatmul.mubr.f32.gmra.mrb[0].mxu0 %v119
    %v879 = vpop.f32.mrb[0].mxu0
    %v880 = vadd.f32 0.0, %v879
    %v881 = vpop.f32.mrb[0].mxu0
    %882 = vmatprep.mubr.f32.mxu0 0.0
    %883 = vmatmul.mubr.f32.gmra.mrb[0].mxu0 %v122
    %v884 = vpop.f32.mrb[0].mxu0
    %v885 = vadd.f32 0.0, %v884
    %v886 = vpop.f32.mrb[0].mxu0
    %887 = vmatprep.mubr.f32.mxu0 0.0
    %888 = vmatmul.mubr.f32.gmra.mrb[0].mxu0 %v125
    %v889 = vpop.f32.mrb[0].mxu0
    %v890 = vadd.f32 0.0, %v889
    %v891 = vpop.f32.mrb[0].mxu0
    %892 = vdwg.mxu0
    %893 = vmatprep.subr.mxu0 0.0
    %894 = vmatpush1.msra.mxu0 %v717
    %895 = vmatprep.subr.mxu0 0.0
    %896 = vmatpush1.msra.mxu0 %v718
    %897 = vmatprep.subr.mxu0 0.0
    %898 = vmatpush1.msra.mxu0 %v719
    %899 = vmatprep.subr.mxu0 0.0
    %900 = vmatpush1.msra.mxu0 %v720
    %901 = vmatprep.subr.mxu0 0.0
    %902 = vmatpush1.msra.mxu0 %v721
    %903 = vmatprep.subr.mxu0 0.0
    %904 = vmatpush1.msra.mxu0 %v722
    %905 = vmatprep.subr.mxu0 0.0
    %906 = vmatpush1.msra.mxu0 %v723
    %907 = vmatprep.subr.mxu0 0.0
    %908 = vmatpush1.msra.mxu0 %v724
    %909 = vmatprep.subr.mxu0 0.0
    %910 = vmatpush1.msra.mxu0 %v725
    %911 = vmatprep.subr.mxu0 0.0
    %912 = vmatpush1.msra.mxu0 %v726
    %913 = vmatprep.subr.mxu0 0.0
    %914 = vmatpush1.msra.mxu0 %v727
    %915 = vmatprep.subr.mxu0 0.0
    %916 = vmatpush1.msra.mxu0 %v728
    %917 = vmatprep.subr.mxu0 0.0
    %918 = vmatpush1.msra.mxu0 %v729
    %919 = vmatprep.subr.mxu0 0.0
    %920 = vmatpush1.msra.mxu0 %v730
    %921 = vmatprep.subr.mxu0 0.0
    %922 = vmatpush1.msra.mxu0 %v731
    %923 = vmatprep.subr.mxu0 0.0
    %924 = vmatpush1.msra.mxu0 %v732
    %925 = vmatprep.subr.mxu0 0.0
    %926 = vmatpush1.msra.mxu0 0.0
    %927 = vmatprep.subr.mxu0 0.0
    %928 = vmatpush1.msra.mxu0 0.0
    %929 = vmatprep.subr.mxu0 0.0
    %930 = vmatpush1.msra.mxu0 0.0
    %931 = vmatprep.subr.mxu0 0.0
    %932 = vmatpush1.msra.mxu0 0.0
    %933 = vmatprep.subr.mxu0 0.0
    %934 = vmatpush1.msra.mxu0 0.0
    %935 = vmatprep.subr.mxu0 0.0
    %936 = vmatpush1.msra.mxu0 0.0
    %937 = vmatprep.subr.mxu0 0.0
    %938 = vmatpush1.msra.mxu0 0.0
    %939 = vmatprep.subr.mxu0 0.0
    %940 = vmatpush1.msra.mxu0 0.0
    %941 = vmatprep.subr.mxu0 0.0
    %942 = vmatpush1.msra.mxu0 0.0
    %943 = vmatprep.subr.mxu0 0.0
    %944 = vmatpush1.msra.mxu0 0.0
    %945 = vmatprep.subr.mxu0 0.0
    %946 = vmatpush1.msra.mxu0 0.0
    %947 = vmatprep.subr.mxu0 0.0
    %948 = vmatpush1.msra.mxu0 0.0
    %949 = vmatprep.subr.mxu0 0.0
    %950 = vmatpush1.msra.mxu0 0.0
    %951 = vmatprep.subr.mxu0 0.0
    %952 = vmatpush1.msra.mxu0 0.0
    %953 = vmatprep.subr.mxu0 0.0
    %954 = vmatpush1.msra.mxu0 0.0
    %955 = vmatprep.subr.mxu0 0.0
    %956 = vmatpush1.msra.mxu0 0.0
    %957 = vmatprep.mubr.f32.mxu0 0.0
    %958 = vmatmul.mubr.f32.gmra.mrb[0].mxu0 %v805
    %v959 = vpop.f32.mrb[0].mxu0
    %v960 = vadd.f32 0.0, %v959
    %v961 = vpop.f32.mrb[0].mxu0
    %962 = vmatprep.mubr.f32.mxu0 0.0
    %963 = vmatmul.mubr.f32.gmra.mrb[0].mxu0 %v810
    %v964 = vpop.f32.mrb[0].mxu0
    %v965 = vadd.f32 0.0, %v964
    %v966 = vpop.f32.mrb[0].mxu0
    %967 = vdwg.mxu0
    %968 = vmatprep.subr.mxu0 0.0
    %969 = vmatpush1.msra.mxu0 %v717
    %970 = vmatprep.subr.mxu0 0.0
    %971 = vmatpush1.msra.mxu0 %v718
    %972 = vmatprep.subr.mxu0 0.0
    %973 = vmatpush1.msra.mxu0 %v719
    %974 = vmatprep.subr.mxu0 0.0
    %975 = vmatpush1.msra.mxu0 %v720
    %976 = vmatprep.subr.mxu0 0.0
    %977 = vmatpush1.msra.mxu0 %v721
    %978 = vmatprep.subr.mxu0 0.0
    %979 = vmatpush1.msra.mxu0 %v722
    %980 = vmatprep.subr.mxu0 0.0
    %981 = vmatpush1.msra.mxu0 %v723
    %982 = vmatprep.subr.mxu0 0.0
    %983 = vmatpush1.msra.mxu0 %v724
    %984 = vmatprep.subr.mxu0 0.0
    %985 = vmatpush1.msra.mxu0 %v725
    %986 = vmatprep.subr.mxu0 0.0
    %987 = vmatpush1.msra.mxu0 %v726
    %988 = vmatprep.subr.mxu0 0.0
    %989 = vmatpush1.msra.mxu0 %v727
    %990 = vmatprep.subr.mxu0 0.0
    %991 = vmatpush1.msra.mxu0 %v728
    %992 = vmatprep.subr.mxu0 0.0
    %993 = vmatpush1.msra.mxu0 %v729
    %994 = vmatprep.subr.mxu0 0.0
    %995 = vmatpush1.msra.mxu0 %v730
    %996 = vmatprep.subr.mxu0 0.0
    %997 = vmatpush1.msra.mxu0 %v731
    %998 = vmatprep.subr.mxu0 0.0
    %999 = vmatpush1.msra.mxu0 %v732
    %1000 = vmatprep.subr.mxu0 0.0
    %1001 = vmatpush1.msra.mxu0 0.0
    %1002 = vmatprep.subr.mxu0 0.0
    %1003 = vmatpush1.msra.mxu0 0.0
    %1004 = vmatprep.subr.mxu0 0.0
    %1005 = vmatpush1.msra.mxu0 0.0
    %1006 = vmatprep.subr.mxu0 0.0
    %1007 = vmatpush1.msra.mxu0 0.0
    %1008 = vmatprep.subr.mxu0 0.0
    %1009 = vmatpush1.msra.mxu0 0.0
    %1010 = vmatprep.subr.mxu0 0.0
    %1011 = vmatpush1.msra.mxu0 0.0
    %1012 = vmatprep.subr.mxu0 0.0
    %1013 = vmatpush1.msra.mxu0 0.0
    %1014 = vmatprep.subr.mxu0 0.0
    %1015 = vmatpush1.msra.mxu0 0.0
    %1016 = vmatprep.subr.mxu0 0.0
    %1017 = vmatpush1.msra.mxu0 0.0
    %1018 = vmatprep.subr.mxu0 0.0
    %1019 = vmatpush1.msra.mxu0 0.0
    %1020 = vmatprep.subr.mxu0 0.0
    %1021 = vmatpush1.msra.mxu0 0.0
    %1022 = vmatprep.subr.mxu0 0.0
    %1023 = vmatpush1.msra.mxu0 0.0
    %1024 = vmatprep.subr.mxu0 0.0
    %1025 = vmatpush1.msra.mxu0 0.0
    %1026 = vmatprep.subr.mxu0 0.0
    %1027 = vmatpush1.msra.mxu0 0.0
    %1028 = vmatprep.subr.mxu0 0.0
    %1029 = vmatpush1.msra.mxu0 0.0
    %1030 = vmatprep.subr.mxu0 0.0
    %1031 = vmatpush1.msra.mxu0 0.0
    %1032 = vmatprep.mubr.f32.mxu0 0.0
    %1033 = vmatmul.mubr.f32.gmra.mrb[0].mxu0 %v880
    %v1034 = vpop.f32.mrb[0].mxu0
    %v1035 = vadd.f32 0.0, %v1034
    %v1036 = vpop.f32.mrb[0].mxu0
    %1037 = vmatprep.mubr.f32.mxu0 0.0
    %1038 = vmatmul.mubr.f32.gmra.mrb[0].mxu0 %v885
    %v1039 = vpop.f32.mrb[0].mxu0
    %v1040 = vadd.f32 0.0, %v1039
    %v1041 = vpop.f32.mrb[0].mxu0
    %1042 = vmatprep.mubr.f32.mxu0 0.0
    %1043 = vmatmul.mubr.f32.gmra.mrb[0].mxu0 %v890
    %v1044 = vpop.f32.mrb[0].mxu0
    %v1045 = vadd.f32 0.0, %v1044
    %v1046 = vpop.f32.mrb[0].mxu0
    %1047 = vdwg.mxu0
    %1048 = vst [vmem:[#allocation3] sm:$0xff] %v960
    %1049 = vst [vmem:[#allocation3 + $0x8] sm:$0xff] %v965
    %1050 = vst [vmem:[#allocation3 + $0x10] sm:$0xff] %v1035
    %1051 = vst [vmem:[#allocation3 + $0x18] sm:$0xff] %v1040
    %1052 = vst [vmem:[#allocation3 + $0x20] sm:$0xff] %v1045
    %v1053 = vld [vmem:[#allocation3] sm:$0xff]
    %v1054 = vld [vmem:[#allocation3 + $0x8] sm:$0xff]
    %v1055 = vld [vmem:[#allocation3 + $0x10] sm:$0xff]
    %v1056 = vld [vmem:[#allocation3 + $0x18] sm:$0xff]
    %v1057 = vld [vmem:[#allocation3 + $0x20] sm:$0xff]
    %s1058 = scalar_lea.vmem %s6, 256
    %v1059 = vld [vmem:[%s1058] sm:$0xff]
    %v1060 = vld [vmem:[%s1058 + $0x8] sm:$0xff]
    %v1061 = vld [vmem:[%s1058 + $0x10] sm:$0xff]
    %v1062 = vld [vmem:[%s1058 + $0x18] sm:$0xff]
    %v1063 = vld [vmem:[%s1058 + $0x20] sm:$0xff]
    %v1064 = vld [vmem:[%s1058 + $0x28] sm:$0xff]
    %v1065 = vld [vmem:[%s1058 + $0x30] sm:$0xff]
    %v1066 = vld [vmem:[%s1058 + $0x38] sm:$0xff]
    %v1067 = vld [vmem:[%s1058 + $0x40] sm:$0xff]
    %v1068 = vld [vmem:[%s1058 + $0x48] sm:$0xff]
    %v1069 = vld [vmem:[%s1058 + $0x50] sm:$0xff]
    %v1070 = vld [vmem:[%s1058 + $0x58] sm:$0xff]
    %v1071 = vld [vmem:[%s1058 + $0x60] sm:$0xff]
    %v1072 = vld [vmem:[%s1058 + $0x68] sm:$0xff]
    %v1073 = vld [vmem:[%s1058 + $0x70] sm:$0xff]
    %v1074 = vld [vmem:[%s1058 + $0x78] sm:$0xff]
    %1075 = vmatprep.subr.mxu0 0.0
    %1076 = vmatpush1.msra.mxu0 %v1059
    %1077 = vmatprep.subr.mxu0 0.0
    %1078 = vmatpush1.msra.mxu0 %v1060
    %1079 = vmatprep.subr.mxu0 0.0
    %1080 = vmatpush1.msra.mxu0 %v1061
    %1081 = vmatprep.subr.mxu0 0.0
    %1082 = vmatpush1.msra.mxu0 %v1062
    %1083 = vmatprep.subr.mxu0 0.0
    %1084 = vmatpush1.msra.mxu0 %v1063
    %1085 = vmatprep.subr.mxu0 0.0
    %1086 = vmatpush1.msra.mxu0 %v1064
    %1087 = vmatprep.subr.mxu0 0.0
    %1088 = vmatpush1.msra.mxu0 %v1065
    %1089 = vmatprep.subr.mxu0 0.0
    %1090 = vmatpush1.msra.mxu0 %v1066
    %1091 = vmatprep.subr.mxu0 0.0
    %1092 = vmatpush1.msra.mxu0 %v1067
    %1093 = vmatprep.subr.mxu0 0.0
    %1094 = vmatpush1.msra.mxu0 %v1068
    %1095 = vmatprep.subr.mxu0 0.0
    %1096 = vmatpush1.msra.mxu0 %v1069
    %1097 = vmatprep.subr.mxu0 0.0
    %1098 = vmatpush1.msra.mxu0 %v1070
    %1099 = vmatprep.subr.mxu0 0.0
    %1100 = vmatpush1.msra.mxu0 %v1071
    %1101 = vmatprep.subr.mxu0 0.0
    %1102 = vmatpush1.msra.mxu0 %v1072
    %1103 = vmatprep.subr.mxu0 0.0
    %1104 = vmatpush1.msra.mxu0 %v1073
    %1105 = vmatprep.subr.mxu0 0.0
    %1106 = vmatpush1.msra.mxu0 %v1074
    %1107 = vmatprep.subr.mxu0 0.0
    %1108 = vmatpush1.msra.mxu0 0.0
    %1109 = vmatprep.subr.mxu0 0.0
    %1110 = vmatpush1.msra.mxu0 0.0
    %1111 = vmatprep.subr.mxu0 0.0
    %1112 = vmatpush1.msra.mxu0 0.0
    %1113 = vmatprep.subr.mxu0 0.0
    %1114 = vmatpush1.msra.mxu0 0.0
    %1115 = vmatprep.subr.mxu0 0.0
    %1116 = vmatpush1.msra.mxu0 0.0
    %1117 = vmatprep.subr.mxu0 0.0
    %1118 = vmatpush1.msra.mxu0 0.0
    %1119 = vmatprep.subr.mxu0 0.0
    %1120 = vmatpush1.msra.mxu0 0.0
    %1121 = vmatprep.subr.mxu0 0.0
    %1122 = vmatpush1.msra.mxu0 0.0
    %1123 = vmatprep.subr.mxu0 0.0
    %1124 = vmatpush1.msra.mxu0 0.0
    %1125 = vmatprep.subr.mxu0 0.0
    %1126 = vmatpush1.msra.mxu0 0.0
    %1127 = vmatprep.subr.mxu0 0.0
    %1128 = vmatpush1.msra.mxu0 0.0
    %1129 = vmatprep.subr.mxu0 0.0
    %1130 = vmatpush1.msra.mxu0 0.0
    %1131 = vmatprep.subr.mxu0 0.0
    %1132 = vmatpush1.msra.mxu0 0.0
    %1133 = vmatprep.subr.mxu0 0.0
    %1134 = vmatpush1.msra.mxu0 0.0
    %1135 = vmatprep.subr.mxu0 0.0
    %1136 = vmatpush1.msra.mxu0 0.0
    %1137 = vmatprep.subr.mxu0 0.0
    %1138 = vmatpush1.msra.mxu0 0.0
    %1139 = vmatprep.mubr.f32.mxu0 0.0
    %1140 = vmatmul.mubr.f32.gmra.mrb[0].mxu0 %v1053
    %v1141 = vpop.f32.mrb[0].mxu0
    %v1142 = vadd.f32 0.0, %v1141
    %v1143 = vpop.f32.mrb[0].mxu0
    %1144 = vmatprep.mubr.f32.mxu0 0.0
    %1145 = vmatmul.mubr.f32.gmra.mrb[0].mxu0 %v1054
    %v1146 = vpop.f32.mrb[0].mxu0
    %v1147 = vadd.f32 0.0, %v1146
    %v1148 = vpop.f32.mrb[0].mxu0
    %1149 = vmatprep.mubr.f32.mxu0 0.0
    %1150 = vmatmul.mubr.f32.gmra.mrb[0].mxu0 %v1055
    %v1151 = vpop.f32.mrb[0].mxu0
    %v1152 = vadd.f32 0.0, %v1151
    %v1153 = vpop.f32.mrb[0].mxu0
    %1154 = vmatprep.mubr.f32.mxu0 0.0
    %1155 = vmatmul.mubr.f32.gmra.mrb[0].mxu0 %v1056
    %v1156 = vpop.f32.mrb[0].mxu0
    %v1157 = vadd.f32 0.0, %v1156
    %v1158 = vpop.f32.mrb[0].mxu0
    %1159 = vmatprep.mubr.f32.mxu0 0.0
    %1160 = vmatmul.mubr.f32.gmra.mrb[0].mxu0 %v1057
    %v1161 = vpop.f32.mrb[0].mxu0
    %v1162 = vadd.f32 0.0, %v1161
    %v1163 = vpop.f32.mrb[0].mxu0
    %1164 = vdwg.mxu0
    %1165 = vset.pattern.permute.xlu0 1
    %1166 = vperm.xlu0 %1165, %v212
    %v1167 = vpop.permute.xlu0 %1166
    %1169 = vset.pattern.permute.xlu0 1
    %1170 = vperm.xlu0 %1169, %v213
    %v1171 = vpop.permute.xlu0 %1170
    %1173 = vset.pattern.permute.xlu0 1
    %1174 = vperm.xlu0 %1173, %v214
    %v1175 = vpop.permute.xlu0 %1174
    %1177 = vset.pattern.permute.xlu0 1
    %1178 = vperm.xlu0 %1177, %v215
    %v1179 = vpop.permute.xlu0 %1178
    %1181 = vset.pattern.permute.xlu0 1
    %1182 = vperm.xlu0 %1181, %v216
    %v1183 = vpop.permute.xlu0 %1182
    %v1185 = vmul.f32 %v1142, %v1167
    %v1186 = vmul.f32 %v1147, %v1171
    %v1187 = vmul.f32 %v1152, %v1175
    %v1188 = vmul.f32 %v1157, %v1179
    %v1189 = vmul.f32 %v1162, %v1183
    %1190 = vst [vmem:[#allocation3] sm:$0xff] %v1185
    %1191 = vst [vmem:[#allocation3 + $0x8] sm:$0xff] %v1186
    %1192 = vst [vmem:[#allocation3 + $0x10] sm:$0xff] %v1187
    %1193 = vst [vmem:[#allocation3 + $0x18] sm:$0xff] %v1188
    %1194 = vst [vmem:[#allocation3 + $0x20] sm:$0xff] %v1189
    %s1195 = scalar_lea.vmem %s6, 384
    %v1196 = vld [vmem:[%s1195] sm:$0xff]
    %v1197 = vld [vmem:[%s1195 + $0x8] sm:$0xff]
    %v1198 = vld [vmem:[%s1195 + $0x10] sm:$0xff]
    %v1199 = vld [vmem:[%s1195 + $0x18] sm:$0xff]
    %v1200 = vld [vmem:[%s1195 + $0x20] sm:$0xff]
    %v1201 = vld [vmem:[%s1195 + $0x28] sm:$0xff]
    %v1202 = vld [vmem:[%s1195 + $0x30] sm:$0xff]
    %v1203 = vld [vmem:[%s1195 + $0x38] sm:$0xff]
    %v1204 = vld [vmem:[%s1195 + $0x40] sm:$0xff]
    %v1205 = vld [vmem:[%s1195 + $0x48] sm:$0xff]
    %v1206 = vld [vmem:[%s1195 + $0x50] sm:$0xff]
    %v1207 = vld [vmem:[%s1195 + $0x58] sm:$0xff]
    %v1208 = vld [vmem:[%s1195 + $0x60] sm:$0xff]
    %v1209 = vld [vmem:[%s1195 + $0x68] sm:$0xff]
    %v1210 = vld [vmem:[%s1195 + $0x70] sm:$0xff]
    %v1211 = vld [vmem:[%s1195 + $0x78] sm:$0xff]
    %v1212 = vld [vmem:[#allocation3] sm:$0xff]
    %v1213 = vld [vmem:[#allocation3 + $0x8] sm:$0xff]
    %v1214 = vld [vmem:[#allocation3 + $0x10] sm:$0xff]
    %v1215 = vld [vmem:[#allocation3 + $0x18] sm:$0xff]
    %v1216 = vld [vmem:[#allocation3 + $0x20] sm:$0xff]
    %1217 = vmatprep.subr.mxu0 0.0
    %1218 = vmatpush1.msra.mxu0 %v1214
    %1219 = vmatprep.subr.mxu0 0.0
    %1220 = vmatpush1.msra.mxu0 %v1215
    %1221 = vmatprep.subr.mxu0 0.0
    %1222 = vmatpush1.msra.mxu0 %v1216
    %1223 = vmatprep.subr.mxu0 0.0
    %1224 = vmatpush1.msra.mxu0 0.0
    %1225 = vmatprep.subr.mxu0 0.0
    %1226 = vmatpush1.msra.mxu0 0.0
    %1227 = vmatprep.subr.mxu0 0.0
    %1228 = vmatpush1.msra.mxu0 0.0
    %1229 = vmatprep.subr.mxu0 0.0
    %1230 = vmatpush1.msra.mxu0 0.0
    %1231 = vmatprep.subr.mxu0 0.0
    %1232 = vmatpush1.msra.mxu0 0.0
    %1233 = vmatprep.subr.mxu0 0.0
    %1234 = vmatpush1.msra.mxu0 0.0
    %1235 = vmatprep.subr.mxu0 0.0
    %1236 = vmatpush1.msra.mxu0 0.0
    %1237 = vmatprep.subr.mxu0 0.0
    %1238 = vmatpush1.msra.mxu0 0.0
    %1239 = vmatprep.subr.mxu0 0.0
    %1240 = vmatpush1.msra.mxu0 0.0
    %1241 = vmatprep.subr.mxu0 0.0
    %1242 = vmatpush1.msra.mxu0 0.0
    %1243 = vmatprep.subr.mxu0 0.0
    %1244 = vmatpush1.msra.mxu0 0.0
    %1245 = vmatprep.subr.mxu0 0.0
    %1246 = vmatpush1.msra.mxu0 0.0
    %1247 = vmatprep.subr.mxu0 0.0
    %1248 = vmatpush1.msra.mxu0 0.0
    %1249 = vmatprep.subr.mxu0 0.0
    %1250 = vmatpush1.msra.mxu0 0.0
    %1251 = vmatprep.subr.mxu0 0.0
    %1252 = vmatpush1.msra.mxu0 0.0
    %1253 = vmatprep.subr.mxu0 0.0
    %1254 = vmatpush1.msra.mxu0 0.0
    %1255 = vmatprep.subr.mxu0 0.0
    %1256 = vmatpush1.msra.mxu0 0.0
    %1257 = vmatprep.subr.mxu0 0.0
    %1258 = vmatpush1.msra.mxu0 0.0
    %1259 = vmatprep.subr.mxu0 0.0
    %1260 = vmatpush1.msra.mxu0 0.0
    %1261 = vmatprep.subr.mxu0 0.0
    %1262 = vmatpush1.msra.mxu0 0.0
    %1263 = vmatprep.subr.mxu0 0.0
    %1264 = vmatpush1.msra.mxu0 0.0
    %1265 = vmatprep.subr.mxu0 0.0
    %1266 = vmatpush1.msra.mxu0 0.0
    %1267 = vmatprep.subr.mxu0 0.0
    %1268 = vmatpush1.msra.mxu0 0.0
    %1269 = vmatprep.subr.mxu0 0.0
    %1270 = vmatpush1.msra.mxu0 0.0
    %1271 = vmatprep.subr.mxu0 0.0
    %1272 = vmatpush1.msra.mxu0 0.0
    %1273 = vmatprep.subr.mxu0 0.0
    %1274 = vmatpush1.msra.mxu0 0.0
    %1275 = vmatprep.subr.mxu0 0.0
    %1276 = vmatpush1.msra.mxu0 0.0
    %1277 = vmatprep.subr.mxu0 0.0
    %1278 = vmatpush1.msra.mxu0 0.0
    %1279 = vmatprep.subr.mxu0 0.0
    %1280 = vmatpush1.msra.mxu0 0.0
    %1281 = vmatprep.mubr.f32.mxu0 0.0
    %1282 = vmatmul.mubr.f32.gmra.mrb[0].mxu0 %v37
    %v1283 = vpop.f32.mrb[0].mxu0
    %v1284 = vadd.f32 0.0, %v1283
    %v1285 = vpop.f32.mrb[0].mxu0
    %1286 = vmatprep.mubr.f32.mxu0 0.0
    %1287 = vmatmul.mubr.f32.gmra.mrb[0].mxu0 %v40
    %v1288 = vpop.f32.mrb[0].mxu0
    %v1289 = vadd.f32 0.0, %v1288
    %v1290 = vpop.f32.mrb[0].mxu0
    %1291 = vdwg.mxu0
    %1292 = vmatprep.subr.mxu0 0.0
    %1293 = vmatpush1.msra.mxu0 %v1212
    %1294 = vmatprep.subr.mxu0 0.0
    %1295 = vmatpush1.msra.mxu0 %v1213
    %1296 = vmatprep.subr.mxu0 0.0
    %1297 = vmatpush1.msra.mxu0 0.0
    %1298 = vmatprep.subr.mxu0 0.0
    %1299 = vmatpush1.msra.mxu0 0.0
    %1300 = vmatprep.subr.mxu0 0.0
    %1301 = vmatpush1.msra.mxu0 0.0
    %1302 = vmatprep.subr.mxu0 0.0
    %1303 = vmatpush1.msra.mxu0 0.0
    %1304 = vmatprep.subr.mxu0 0.0
    %1305 = vmatpush1.msra.mxu0 0.0
    %1306 = vmatprep.subr.mxu0 0.0
    %1307 = vmatpush1.msra.mxu0 0.0
    %1308 = vmatprep.subr.mxu0 0.0
    %1309 = vmatpush1.msra.mxu0 0.0
    %1310 = vmatprep.subr.mxu0 0.0
    %1311 = vmatpush1.msra.mxu0 0.0
    %1312 = vmatprep.subr.mxu0 0.0
    %1313 = vmatpush1.msra.mxu0 0.0
    %1314 = vmatprep.subr.mxu0 0.0
    %1315 = vmatpush1.msra.mxu0 0.0
    %1316 = vmatprep.subr.mxu0 0.0
    %1317 = vmatpush1.msra.mxu0 0.0
    %1318 = vmatprep.subr.mxu0 0.0
    %1319 = vmatpush1.msra.mxu0 0.0
    %1320 = vmatprep.subr.mxu0 0.0
    %1321 = vmatpush1.msra.mxu0 0.0
    %1322 = vmatprep.subr.mxu0 0.0
    %1323 = vmatpush1.msra.mxu0 0.0
    %1324 = vmatprep.subr.mxu0 0.0
    %1325 = vmatpush1.msra.mxu0 0.0
    %1326 = vmatprep.subr.mxu0 0.0
    %1327 = vmatpush1.msra.mxu0 0.0
    %1328 = vmatprep.subr.mxu0 0.0
    %1329 = vmatpush1.msra.mxu0 0.0
    %1330 = vmatprep.subr.mxu0 0.0
    %1331 = vmatpush1.msra.mxu0 0.0
    %1332 = vmatprep.subr.mxu0 0.0
    %1333 = vmatpush1.msra.mxu0 0.0
    %1334 = vmatprep.subr.mxu0 0.0
    %1335 = vmatpush1.msra.mxu0 0.0
    %1336 = vmatprep.subr.mxu0 0.0
    %1337 = vmatpush1.msra.mxu0 0.0
    %1338 = vmatprep.subr.mxu0 0.0
    %1339 = vmatpush1.msra.mxu0 0.0
    %1340 = vmatprep.subr.mxu0 0.0
    %1341 = vmatpush1.msra.mxu0 0.0
    %1342 = vmatprep.subr.mxu0 0.0
    %1343 = vmatpush1.msra.mxu0 0.0
    %1344 = vmatprep.subr.mxu0 0.0
    %1345 = vmatpush1.msra.mxu0 0.0
    %1346 = vmatprep.subr.mxu0 0.0
    %1347 = vmatpush1.msra.mxu0 0.0
    %1348 = vmatprep.subr.mxu0 0.0
    %1349 = vmatpush1.msra.mxu0 0.0
    %1350 = vmatprep.subr.mxu0 0.0
    %1351 = vmatpush1.msra.mxu0 0.0
    %1352 = vmatprep.subr.mxu0 0.0
    %1353 = vmatpush1.msra.mxu0 0.0
    %1354 = vmatprep.subr.mxu0 0.0
    %1355 = vmatpush1.msra.mxu0 0.0
    %1356 = vmatprep.mubr.f32.mxu0 0.0
    %1357 = vmatmul.mubr.f32.gmra.mrb[0].mxu0 %v119
    %v1358 = vpop.f32.mrb[0].mxu0
    %v1359 = vadd.f32 0.0, %v1358
    %v1360 = vpop.f32.mrb[0].mxu0
    %1361 = vmatprep.mubr.f32.mxu0 0.0
    %1362 = vmatmul.mubr.f32.gmra.mrb[0].mxu0 %v122
    %v1363 = vpop.f32.mrb[0].mxu0
    %v1364 = vadd.f32 0.0, %v1363
    %v1365 = vpop.f32.mrb[0].mxu0
    %1366 = vmatprep.mubr.f32.mxu0 0.0
    %1367 = vmatmul.mubr.f32.gmra.mrb[0].mxu0 %v125
    %v1368 = vpop.f32.mrb[0].mxu0
    %v1369 = vadd.f32 0.0, %v1368
    %v1370 = vpop.f32.mrb[0].mxu0
    %1371 = vdwg.mxu0
    %1372 = vmatprep.subr.mxu0 0.0
    %1373 = vmatpush1.msra.mxu0 %v1196
    %1374 = vmatprep.subr.mxu0 0.0
    %1375 = vmatpush1.msra.mxu0 %v1197
    %1376 = vmatprep.subr.mxu0 0.0
    %1377 = vmatpush1.msra.mxu0 %v1198
    %1378 = vmatprep.subr.mxu0 0.0
    %1379 = vmatpush1.msra.mxu0 %v1199
    %1380 = vmatprep.subr.mxu0 0.0
    %1381 = vmatpush1.msra.mxu0 %v1200
    %1382 = vmatprep.subr.mxu0 0.0
    %1383 = vmatpush1.msra.mxu0 %v1201
    %1384 = vmatprep.subr.mxu0 0.0
    %1385 = vmatpush1.msra.mxu0 %v1202
    %1386 = vmatprep.subr.mxu0 0.0
    %1387 = vmatpush1.msra.mxu0 %v1203
    %1388 = vmatprep.subr.mxu0 0.0
    %1389 = vmatpush1.msra.mxu0 %v1204
    %1390 = vmatprep.subr.mxu0 0.0
    %1391 = vmatpush1.msra.mxu0 %v1205
    %1392 = vmatprep.subr.mxu0 0.0
    %1393 = vmatpush1.msra.mxu0 %v1206
    %1394 = vmatprep.subr.mxu0 0.0
    %1395 = vmatpush1.msra.mxu0 %v1207
    %1396 = vmatprep.subr.mxu0 0.0
    %1397 = vmatpush1.msra.mxu0 %v1208
    %1398 = vmatprep.subr.mxu0 0.0
    %1399 = vmatpush1.msra.mxu0 %v1209
    %1400 = vmatprep.subr.mxu0 0.0
    %1401 = vmatpush1.msra.mxu0 %v1210
    %1402 = vmatprep.subr.mxu0 0.0
    %1403 = vmatpush1.msra.mxu0 %v1211
    %1404 = vmatprep.subr.mxu0 0.0
    %1405 = vmatpush1.msra.mxu0 0.0
    %1406 = vmatprep.subr.mxu0 0.0
    %1407 = vmatpush1.msra.mxu0 0.0
    %1408 = vmatprep.subr.mxu0 0.0
    %1409 = vmatpush1.msra.mxu0 0.0
    %1410 = vmatprep.subr.mxu0 0.0
    %1411 = vmatpush1.msra.mxu0 0.0
    %1412 = vmatprep.subr.mxu0 0.0
    %1413 = vmatpush1.msra.mxu0 0.0
    %1414 = vmatprep.subr.mxu0 0.0
    %1415 = vmatpush1.msra.mxu0 0.0
    %1416 = vmatprep.subr.mxu0 0.0
    %1417 = vmatpush1.msra.mxu0 0.0
    %1418 = vmatprep.subr.mxu0 0.0
    %1419 = vmatpush1.msra.mxu0 0.0
    %1420 = vmatprep.subr.mxu0 0.0
    %1421 = vmatpush1.msra.mxu0 0.0
    %1422 = vmatprep.subr.mxu0 0.0
    %1423 = vmatpush1.msra.mxu0 0.0
    %1424 = vmatprep.subr.mxu0 0.0
    %1425 = vmatpush1.msra.mxu0 0.0
    %1426 = vmatprep.subr.mxu0 0.0
    %1427 = vmatpush1.msra.mxu0 0.0
    %1428 = vmatprep.subr.mxu0 0.0
    %1429 = vmatpush1.msra.mxu0 0.0
    %1430 = vmatprep.subr.mxu0 0.0
    %1431 = vmatpush1.msra.mxu0 0.0
    %1432 = vmatprep.subr.mxu0 0.0
    %1433 = vmatpush1.msra.mxu0 0.0
    %1434 = vmatprep.subr.mxu0 0.0
    %1435 = vmatpush1.msra.mxu0 0.0
    %1436 = vmatprep.mubr.f32.mxu0 0.0
    %1437 = vmatmul.mubr.f32.gmra.mrb[0].mxu0 %v1284
    %v1438 = vpop.f32.mrb[0].mxu0
    %v1439 = vadd.f32 0.0, %v1438
    %v1440 = vpop.f32.mrb[0].mxu0
    %1441 = vmatprep.mubr.f32.mxu0 0.0
    %1442 = vmatmul.mubr.f32.gmra.mrb[0].mxu0 %v1289
    %v1443 = vpop.f32.mrb[0].mxu0
    %v1444 = vadd.f32 0.0, %v1443
    %v1445 = vpop.f32.mrb[0].mxu0
    %1446 = vdwg.mxu0
    %1447 = vmatprep.subr.mxu0 0.0
    %1448 = vmatpush1.msra.mxu0 %v1196
    %1449 = vmatprep.subr.mxu0 0.0
    %1450 = vmatpush1.msra.mxu0 %v1197
    %1451 = vmatprep.subr.mxu0 0.0
    %1452 = vmatpush1.msra.mxu0 %v1198
    %1453 = vmatprep.subr.mxu0 0.0
    %1454 = vmatpush1.msra.mxu0 %v1199
    %1455 = vmatprep.subr.mxu0 0.0
    %1456 = vmatpush1.msra.mxu0 %v1200
    %1457 = vmatprep.subr.mxu0 0.0
    %1458 = vmatpush1.msra.mxu0 %v1201
    %1459 = vmatprep.subr.mxu0 0.0
    %1460 = vmatpush1.msra.mxu0 %v1202
    %1461 = vmatprep.subr.mxu0 0.0
    %1462 = vmatpush1.msra.mxu0 %v1203
    %1463 = vmatprep.subr.mxu0 0.0
    %1464 = vmatpush1.msra.mxu0 %v1204
    %1465 = vmatprep.subr.mxu0 0.0
    %1466 = vmatpush1.msra.mxu0 %v1205
    %1467 = vmatprep.subr.mxu0 0.0
    %1468 = vmatpush1.msra.mxu0 %v1206
    %1469 = vmatprep.subr.mxu0 0.0
    %1470 = vmatpush1.msra.mxu0 %v1207
    %1471 = vmatprep.subr.mxu0 0.0
    %1472 = vmatpush1.msra.mxu0 %v1208
    %1473 = vmatprep.subr.mxu0 0.0
    %1474 = vmatpush1.msra.mxu0 %v1209
    %1475 = vmatprep.subr.mxu0 0.0
    %1476 = vmatpush1.msra.mxu0 %v1210
    %1477 = vmatprep.subr.mxu0 0.0
    %1478 = vmatpush1.msra.mxu0 %v1211
    %1479 = vmatprep.subr.mxu0 0.0
    %1480 = vmatpush1.msra.mxu0 0.0
    %1481 = vmatprep.subr.mxu0 0.0
    %1482 = vmatpush1.msra.mxu0 0.0
    %1483 = vmatprep.subr.mxu0 0.0
    %1484 = vmatpush1.msra.mxu0 0.0
    %1485 = vmatprep.subr.mxu0 0.0
    %1486 = vmatpush1.msra.mxu0 0.0
    %1487 = vmatprep.subr.mxu0 0.0
    %1488 = vmatpush1.msra.mxu0 0.0
    %1489 = vmatprep.subr.mxu0 0.0
    %1490 = vmatpush1.msra.mxu0 0.0
    %1491 = vmatprep.subr.mxu0 0.0
    %1492 = vmatpush1.msra.mxu0 0.0
    %1493 = vmatprep.subr.mxu0 0.0
    %1494 = vmatpush1.msra.mxu0 0.0
    %1495 = vmatprep.subr.mxu0 0.0
    %1496 = vmatpush1.msra.mxu0 0.0
    %1497 = vmatprep.subr.mxu0 0.0
    %1498 = vmatpush1.msra.mxu0 0.0
    %1499 = vmatprep.subr.mxu0 0.0
    %1500 = vmatpush1.msra.mxu0 0.0
    %1501 = vmatprep.subr.mxu0 0.0
    %1502 = vmatpush1.msra.mxu0 0.0
    %1503 = vmatprep.subr.mxu0 0.0
    %1504 = vmatpush1.msra.mxu0 0.0
    %1505 = vmatprep.subr.mxu0 0.0
    %1506 = vmatpush1.msra.mxu0 0.0
    %1507 = vmatprep.subr.mxu0 0.0
    %1508 = vmatpush1.msra.mxu0 0.0
    %1509 = vmatprep.subr.mxu0 0.0
    %1510 = vmatpush1.msra.mxu0 0.0
    %1511 = vmatprep.mubr.f32.mxu0 0.0
    %1512 = vmatmul.mubr.f32.gmra.mrb[0].mxu0 %v1359
    %v1513 = vpop.f32.mrb[0].mxu0
    %v1514 = vadd.f32 0.0, %v1513
    %v1515 = vpop.f32.mrb[0].mxu0
    %1516 = vmatprep.mubr.f32.mxu0 0.0
    %1517 = vmatmul.mubr.f32.gmra.mrb[0].mxu0 %v1364
    %v1518 = vpop.f32.mrb[0].mxu0
    %v1519 = vadd.f32 0.0, %v1518
    %v1520 = vpop.f32.mrb[0].mxu0
    %1521 = vmatprep.mubr.f32.mxu0 0.0
    %1522 = vmatmul.mubr.f32.gmra.mrb[0].mxu0 %v1369
    %v1523 = vpop.f32.mrb[0].mxu0
    %v1524 = vadd.f32 0.0, %v1523
    %v1525 = vpop.f32.mrb[0].mxu0
    %1526 = vdwg.mxu0
    %1527 = vst [vmem:[#allocation3] sm:$0xff] %v1439
    %1528 = vst [vmem:[#allocation3 + $0x8] sm:$0xff] %v1444
    %1529 = vst [vmem:[#allocation3 + $0x10] sm:$0xff] %v1514
    %1530 = vst [vmem:[#allocation3 + $0x18] sm:$0xff] %v1519
    %1531 = vst [vmem:[#allocation3 + $0x20] sm:$0xff] %v1524
    %v1532 = vld [vmem:[#allocation3] sm:$0xff]
    %v1533 = vld [vmem:[#allocation3 + $0x8] sm:$0xff]
    %v1534 = vld [vmem:[#allocation3 + $0x10] sm:$0xff]
    %v1535 = vld [vmem:[#allocation3 + $0x18] sm:$0xff]
    %v1536 = vld [vmem:[#allocation3 + $0x20] sm:$0xff]
    %v1537 = vld [vmem:[#allocation2] sm:$0xff]
    %v1538 = vld [vmem:[#allocation2 + $0x8] sm:$0xff]
    %v1539 = vld [vmem:[#allocation2 + $0x10] sm:$0xff]
    %v1540 = vld [vmem:[#allocation2 + $0x18] sm:$0xff]
    %v1541 = vld [vmem:[#allocation2 + $0x20] sm:$0xff]
    %v1542 = vmul.f32 %v1532, %v1532
    %v1543 = vmul.f32 %v1533, %v1533
    %v1544 = vmul.f32 %v1534, %v1534
    %v1545 = vmul.f32 %v1535, %v1535
    %v1546 = vmul.f32 %v1536, %v1536
    %1547 = vadd.xlane.f32.xlu0 %v1542
    %v1548 = vpop.xlane.xlu0 %1547
    %1549 = vadd.xlane.f32.xlu0 %v1543
    %v1550 = vpop.xlane.xlu0 %1549
    %1551 = vadd.xlane.f32.xlu0 %v1544
    %v1552 = vpop.xlane.xlu0 %1551
    %1553 = vadd.xlane.f32.xlu0 %v1545
    %v1554 = vpop.xlane.xlu0 %1553
    %1555 = vadd.xlane.f32.xlu0 %v1546
    %v1556 = vpop.xlane.xlu0 %1555
    %v1557 = vmax.f32 %v1548, 1e-24
    %v1558 = vmax.f32 %v1550, 1e-24
    %v1559 = vmax.f32 %v1552, 1e-24
    %v1560 = vmax.f32 %v1554, 1e-24
    %v1561 = vmax.f32 %v1556, 1e-24
    %v1562 = vrsqrt.pop %v1557
    %v1563 = vrsqrt.pop %v1558
    %v1564 = vrsqrt.pop %v1559
    %v1565 = vrsqrt.pop %v1560
    %v1566 = vrsqrt.pop %v1561
    %v1567 = vmul.f32 %v1532, %v1562
    %v1568 = vmul.f32 %v1533, %v1563
    %v1569 = vmul.f32 %v1534, %v1564
    %v1570 = vmul.f32 %v1535, %v1565
    %v1571 = vmul.f32 %v1536, %v1566
    %v1572 = vmul.f32 %v1537, %v1537
    %v1573 = vmul.f32 %v1538, %v1538
    %v1574 = vmul.f32 %v1539, %v1539
    %v1575 = vmul.f32 %v1540, %v1540
    %v1576 = vmul.f32 %v1541, %v1541
    %1577 = vadd.xlane.f32.xlu0 %v1572
    %v1578 = vpop.xlane.xlu0 %1577
    %1579 = vadd.xlane.f32.xlu0 %v1573
    %v1580 = vpop.xlane.xlu0 %1579
    %1581 = vadd.xlane.f32.xlu0 %v1574
    %v1582 = vpop.xlane.xlu0 %1581
    %1583 = vadd.xlane.f32.xlu0 %v1575
    %v1584 = vpop.xlane.xlu0 %1583
    %1585 = vadd.xlane.f32.xlu0 %v1576
    %v1586 = vpop.xlane.xlu0 %1585
    %v1587 = vmax.f32 %v1578, 1e-24
    %v1588 = vmax.f32 %v1580, 1e-24
    %v1589 = vmax.f32 %v1582, 1e-24
    %v1590 = vmax.f32 %v1584, 1e-24
    %v1591 = vmax.f32 %v1586, 1e-24
    %v1592 = vrsqrt.pop %v1587
    %v1593 = vrsqrt.pop %v1588
    %v1594 = vrsqrt.pop %v1589
    %v1595 = vrsqrt.pop %v1590
    %v1596 = vrsqrt.pop %v1591
    %v1597 = vmul.f32 %v1537, %v1592
    %v1598 = vmul.f32 %v1538, %v1593
    %v1599 = vmul.f32 %v1539, %v1594
    %v1600 = vmul.f32 %v1540, %v1595
    %v1601 = vmul.f32 %v1541, %v1596
    %v1602 = vmul.f32 %v1567, %v1597
    %v1603 = vmul.f32 %v1568, %v1598
    %v1604 = vmul.f32 %v1569, %v1599
    %v1605 = vmul.f32 %v1570, %v1600
    %v1606 = vmul.f32 %v1571, %v1601
    %1607 = vadd.xlane.f32.xlu0 %v1602
    %v1608 = vpop.xlane.xlu0 %1607
    %1609 = vadd.xlane.f32.xlu0 %v1603
    %v1610 = vpop.xlane.xlu0 %1609
    %1611 = vadd.xlane.f32.xlu0 %v1604
    %v1612 = vpop.xlane.xlu0 %1611
    %1613 = vadd.xlane.f32.xlu0 %v1605
    %v1614 = vpop.xlane.xlu0 %1613
    %1615 = vadd.xlane.f32.xlu0 %v1606
    %v1616 = vpop.xlane.xlu0 %1615
    %v1617 = vsub.f32 1.0, %v1608
    %v1618 = vsub.f32 1.0, %v1610
    %v1619 = vsub.f32 1.0, %v1612
    %v1620 = vsub.f32 1.0, %v1614
    %v1621 = vsub.f32 1.0, %v1616
    %v1622 = vmul.f32 %v1617, %v1617
    %v1623 = vmul.f32 %v1618, %v1618
    %v1624 = vmul.f32 %v1619, %v1619
    %v1625 = vmul.f32 %v1620, %v1620
    %v1626 = vmul.f32 %v1621, %v1621
    %v1627 = vmul.f32 %v1617, %v1622
    %v1628 = vmul.f32 %v1618, %v1623
    %v1629 = vmul.f32 %v1619, %v1624
    %v1630 = vmul.f32 %v1620, %v1625
    %v1631 = vmul.f32 %v1621, %v1626
    %v1632 = vmul.f32 %v1627, %v212
    %v1633 = vmul.f32 %v1628, %v213
    %v1634 = vmul.f32 %v1629, %v214
    %v1635 = vmul.f32 %v1630, %v215
    %v1636 = vmul.f32 %v1631, %v216
    %1642 = vrot.lane.b32.xlu0 %v1632, 126
    %v1643 = vpop.permute.xlu0 %1642
    %1644 = vrot.lane.b32.xlu0 %v1633, 126
    %v1645 = vpop.permute.xlu0 %1644
    %1646 = vrot.lane.b32.xlu0 %v1634, 126
    %v1647 = vpop.permute.xlu0 %1646
    %1648 = vrot.lane.b32.xlu0 %v1635, 126
    %v1649 = vpop.permute.xlu0 %1648
    %1650 = vrot.lane.b32.xlu0 %v1636, 126
    %v1651 = vpop.permute.xlu0 %1650
    %vm1657 = vcmask 7168
    %v1658 = vsel %vm1657, %v1643, 0.0
    %v1659 = vsel %vm1657, %v1645, 0.0
    %v1660 = vadd.f32 %v1658, %v1659
    %v1661 = vsel %vm1657, %v1647, 0.0
    %v1662 = vadd.f32 %v1660, %v1661
    %v1663 = vsel %vm1657, %v1649, 0.0
    %v1664 = vadd.f32 %v1662, %v1663
    %v1665 = vsel %vm1657, %v1651, 0.0
    %v1666 = vadd.f32 %v1664, %v1665
    %1667 = vadd.xlane.f32.xlu0 %v1666
    %v1668 = vpop.xlane.xlu0 %1667
    %v1669 = vrot.slane %v1668, 4
    %v1670 = vadd.f32 %v1668, %v1669
    %v1671 = vrot.slane %v1670, 2
    %v1672 = vadd.f32 %v1670, %v1671
    %v1673 = vrot.slane %v1672, 1
    %v1674 = vadd.f32 %v1672, %v1673
    %s1675 = vtos %v1674
    %s1676 = scalar_lea.smem [#allocation4], 0
    %1677 = sst [smem:[%s1676]] %s1675
    // Predicated region
    $region30: #{_augmentation_forward.1} parent=1 // pred_check
      _
    $region31: #{_augmentation_forward.1} parent=1 // pred_check_branch
      %1679 = sbr.rel (0) target = $region33
    $region32: #{_augmentation_forward.1} parent=1 // pred_region
      %s1681 = ssub.s32 16, 16
      %1682 = vsyncadd [#allocation5], %s1681
      %1685 = dma.smem_to_hbm [#allocation4], 16, %s7, [#allocation5]
    $region33: #{_augmentation_forward.1} parent=1 // pred_fallthru
      _
    // Predicated region
    $region34: #{_augmentation_forward.1} parent=1 // pred_check
      _
    $region35: #{_augmentation_forward.1} parent=1 // pred_check_branch
      %1687 = sbr.rel (0) target = $region37
    $region36: #{_augmentation_forward.1} parent=1 // pred_region
      %1688 = dma.done [#allocation5], 16
    $region37: #{_augmentation_forward.1} parent=1 // pred_fallthru
      _
    %1689 = sfence
    %1690 = vsyncpa [#allocation5], 1

</llo_original>
